<compile_context>
chip_gen: v5e
topology: v5e:2x2
jax: 0.10.0
libtpu: 0.0.40
codegen_flags: <defaults>
</compile_context>

<pallas_src>
import math
import functools

import jax
import jax.numpy as jnp
from jax.experimental import pallas as pl
from jax.experimental.pallas import tpu as pltpu

LN_EPS = 1e-5   # torch.nn.TransformerEncoderLayer default layer_norm_eps
N_VEC = 10      # packed per-layer vectors: bq,bk,bv,bo,ln1w,ln1b,b1,b2,ln2w,ln2b


# ----------------------------- helpers (traced inside kernels) ---------------

def _layer_norm(x, w, b):
    mu = jnp.mean(x, axis=-1, keepdims=True)
    xc = x - mu
    var = jnp.mean(xc * xc, axis=-1, keepdims=True)
    return xc * jax.lax.rsqrt(var + LN_EPS) * w + b


def _erf(x):
    # Abramowitz & Stegun 7.1.26 rational approximation; the reciprocal of the
    # rational term runs on the EUP (approx) to keep it off the VALU slots.
    a1, a2, a3, a4, a5 = 0.254829592, -0.284496736, 1.421413741, -1.453152027, 1.061405429
    p = 0.3275911
    s = jnp.where(x >= 0.0, 1.0, -1.0)
    ax = jnp.abs(x)
    t = pl.reciprocal(1.0 + p * ax, approx=True)
    poly = ((((a5 * t + a4) * t + a3) * t + a2) * t + a1) * t
    return s * (1.0 - poly * jnp.exp(-ax * ax))


def _gelu_exact(x):
    # PyTorch activation='gelu' uses the exact (erf-based) GELU.
    # TODO(synk): on v6e/v7x this polynomial could run in bf16 (bf16 VALUs);
    #             kept f32 here so the same kernel is also exact-ish on v5e.
    return 0.5 * x * (1.0 + _erf(x * 0.7071067811865476))


# ----------------------------- fused Pallas kernel ----------------------------

def fused_transformer_kernel(
        x_ref, pw_ref, pb_ref, pe_ref,
        wqkv_ref, wo_ref, w1_ref, w2_ref, vecs_ref,
        fcw_ref, fcb_ref,
        out_ref, h_scr, attn_scr, *, nhead):
    layer = pl.program_id(1)
    n_layers = pl.num_programs(1)

    bb, T, d_in = x_ref.shape          # NOTE: keep T a multiple of 8 so the
    D = wo_ref.shape[0]                # (bb*T, D) <-> (bb, T, D) reshapes are free
    F = w1_ref.shape[1]
    dh = D // nhead
    scale = 1.0 / math.sqrt(dh)
    f32, bf16 = jnp.float32, jnp.bfloat16

    # ---- layer-0 prologue: input projection + positional encoding ------------
    @pl.when(layer == 0)
    def _():
        x2 = x_ref[...].reshape(bb * T, d_in)
        h = jnp.dot(x2, pw_ref[...], preferred_element_type=f32) + pb_ref[...]
        h_scr[...] = (h.reshape(bb, T, D) + pe_ref[...]).reshape(bb * T, D)

    # ---- one post-norm encoder layer (inference: dropout = identity) ---------
    x2 = h_scr[...]                    # residual stream, f32, (bb*T, D)
    x2b = x2.astype(bf16)

    def vec(row, n):                   # packed per-layer vector -> (1, n) f32
        return vecs_ref[row:row + 1, :n]

    # Q/K/V: three bf16 matmuls against 128-aligned slabs of one (3, D, D)
    # weight (single DMA); avoids lane-slicing a (bb*T, 3D) result when
    # D % 128 != 0.
    q = jnp.dot(x2b, wqkv_ref[0], preferred_element_type=f32) + vec(0, D)
    k = jnp.dot(x2b, wqkv_ref[1], preferred_element_type=f32) + vec(1, D)
    v = jnp.dot(x2b, wqkv_ref[2], preferred_element_type=f32) + vec(2, D)

    # Fold the 1/sqrt(dh) scale into q once (not per-head on (bb, T, T) scores).
    q3 = (q * scale).astype(bf16).reshape(bb, T, D)
    k3 = k.astype(bf16).reshape(bb, T, D)
    v3 = v.astype(bf16).reshape(bb, T, D)

    # Per-head attention; each head's output is written straight into its
    # column slab of attn_scr so the output projection below is ONE dense
    # (bb*T, D) @ (D, D) matmul and no concatenate / live head outputs exist.
    # TODO(synk): for many heads use a head-batched einsum over a
    #             (bb*nhead, T, dh) layout instead of this static unroll.
    for hd in range(nhead):
        sl = slice(hd * dh, (hd + 1) * dh)
        s = jnp.einsum('bqd,bkd->bqk', q3[:, :, sl], k3[:, :, sl],
                       preferred_element_type=f32)
        p = jnp.exp(s - jnp.max(s, axis=-1, keepdims=True))
        p = p / jnp.sum(p, axis=-1, keepdims=True)      # exact divide (parity)
        o = jnp.einsum('bqk,bkd->bqd', p.astype(bf16), v3[:, :, sl],
                       preferred_element_type=f32)
        attn_scr[:, sl] = o.reshape(bb * T, dh).astype(bf16)

    attn = jnp.dot(attn_scr[...], wo_ref[...], preferred_element_type=f32) + vec(3, D)

    # residual + LayerNorm 1 (statistics and residual stream stay f32)
    h1 = _layer_norm(x2 + attn, vec(4, D), vec(5, D))

    # feed-forward: Linear -> exact GELU -> Linear
    ff = jnp.dot(h1.astype(bf16), w1_ref[...], preferred_element_type=f32) + vec(6, F)
    ff = _gelu_exact(ff)
    ff = jnp.dot(ff.astype(bf16), w2_ref[...], preferred_element_type=f32) + vec(7, D)

    # residual + LayerNorm 2 -> stays resident in VMEM scratch for next layer
    h_new = _layer_norm(h1 + ff, vec(8, D), vec(9, D))
    h_scr[...] = h_new

    # ---- last-layer epilogue: fc on the final time step ----------------------
    @pl.when(layer == n_layers - 1)
    def _():
        h_last = h_new.reshape(bb, T, D)[:, T - 1, :]          # (bb, D)
        out_ref[...] = (jnp.sum(h_last * fcw_ref[...], axis=-1, keepdims=True)
                        + fcb_ref[...])


# ----------------------------- tiling / VMEM budgeting -------------------------

def _vmem_estimate(bb, T, d_in, D, F, vmax):
    """Rough per-grid-step VMEM footprint (bytes) used to size bb and the limit."""
    f32b, bf16b = 4, 2
    n_tok = bb * T
    scr = n_tok * D * (f32b + bf16b)                                # h_scr + attn_scr
    wts = (4 * D * D + 2 * D * F) * bf16b + N_VEC * vmax * f32b     # one layer's weights
    io = (2 * n_tok * d_in * f32b                                   # x tile (2-buffered)
          + (d_in * D + 2 * D + T * D + 1) * f32b                   # constants (1-buffered)
          + 2 * bb * f32b)                                          # output tile
    tmp = n_tok * (3 * D + F) * (f32b + bf16b) + n_tok * T * f32b   # q/k/v/ff temps + scores
    return scr + 2 * wts + io + tmp                                 # 2x: double-buffered weights


def _choose_batch_block(B, T, d_in, D, F, vmax, vmem_budget_bytes):
    # Output block is (bb, 1): bb must be a multiple of 8 or equal to B.
    if B % 8 != 0 or B <= 8:
        return B
    cands = [bb for bb in range(8, B + 1, 8) if B % bb == 0]
    fit = [bb for bb in cands
           if _vmem_estimate(bb, T, d_in, D, F, vmax) <= vmem_budget_bytes]
    if not fit:
        return cands[0]
    # Prefer bb*T a multiple of 256 (MXU M dim on v6e/v7x), then the biggest tile.
    # TODO(synk): on v7x (2 TCs) also cap bb so that B // bb >= 2.
    pref = [bb for bb in fit if (bb * T) % 256 == 0]
    return max(pref) if pref else max(fit)


# ----------------------------- wrapper / glue ---------------------------------

def positional_encoding(seq_len, d_model):
    position = jnp.arange(seq_len, dtype=jnp.float32)[:, None]
    div_term = jnp.exp(jnp.arange(0, d_model, 2, dtype=jnp.float32)
                       * (-math.log(10000.0) / d_model))
    pe = jnp.zeros((seq_len, d_model), jnp.float32)
    pe = pe.at[:, 0::2].set(jnp.sin(position * div_term))
    pe = pe.at[:, 1::2].set(jnp.cos(position * div_term[: d_model // 2]))  # odd-D safe
    return pe[None]  # (1, T, d_model)


def residual_transformer_forward(params, x, *, nhead, batch_block=None,
                                 vmem_budget_bytes=40 * 2 ** 20):
    B, T, d_in = x.shape
    D = params['proj_w'].shape[1]
    F = params['w1'].shape[2]
    L = params['wqkv'].shape[0]
    vmax = params['vecs'].shape[2]

    pe = positional_encoding(T, D)

    bb = (batch_block if batch_block is not None
          else _choose_batch_block(B, T, d_in, D, F, vmax, vmem_budget_bytes))
    assert B % bb == 0
    nb = B // bb

    est = _vmem_estimate(bb, T, d_in, D, F, vmax)
    vmem_limit = int(min(max(2 * est, 32 * 2 ** 20), 56 * 2 ** 20))

    def const_spec(shape):  # never re-DMA'd -> single-buffer to reclaim VMEM
        nd = len(shape)
        return pl.BlockSpec(shape, lambda b, l, _n=nd: (0,) * _n,
                            pipeline_mode=pl.Buffered(1))

    def per_layer(shape):   # stacked (L, ...) weight; squeeze the layer dim
        nd = len(shape)
        return pl.BlockSpec((None,) + shape,
                            lambda b, l, _n=nd: (l,) + (0,) * _n)

    in_specs = [
        pl.BlockSpec((bb, T, d_in), lambda b, l: (b, 0, 0)),   # x
        const_spec((d_in, D)),                                 # proj_w
        const_spec((1, D)),                                    # proj_b
        const_spec((1, T, D)),                                 # pe
        per_layer((3, D, D)),                                  # wq/wk/wv (bf16)
        per_layer((D, D)),                                     # wo       (bf16)
        per_layer((D, F)),                                     # w1       (bf16)
        per_layer((F, D)),                                     # w2       (bf16)
        per_layer((N_VEC, vmax)),                              # packed vectors (f32)
        const_spec((1, D)),                                    # fc_w
        const_spec((1, 1)),                                    # fc_b
    ]
    out_spec = pl.BlockSpec((bb, 1), lambda b, l: (b, 0))

    out = pl.pallas_call(
        functools.partial(fused_transformer_kernel, nhead=nhead),
        out_shape=jax.ShapeDtypeStruct((B, 1), jnp.float32),
        grid=(nb, L),
        in_specs=in_specs,
        out_specs=out_spec,
        scratch_shapes=[pltpu.VMEM((bb * T, D), jnp.float32),    # resident residual stream
                        pltpu.VMEM((bb * T, D), jnp.bfloat16)],  # attention head outputs
        compiler_params=pltpu.CompilerParams(
            dimension_semantics=("parallel", "arbitrary"),
            vmem_limit_bytes=vmem_limit),
    )(x, params['proj_w'], params['proj_b'], pe,
      params['wqkv'], params['wo'], params['w1'], params['w2'], params['vecs'],
      params['fc_w'], params['fc_b'])
    return out[:, 0]  # squeeze(-1) -> (B,)


# ----------------------------- parameter init ---------------------------------

def init_params(key, input_dim, d_model, nhead, num_layers, ff):
    def lin(k, din, dout):
        kw, kb = jax.random.split(k)
        lim = 1.0 / math.sqrt(din)
        w = jax.random.uniform(kw, (din, dout), jnp.float32, -lim, lim)
        b = jax.random.uniform(kb, (dout,), jnp.float32, -lim, lim)
        return w, b

    D, F = d_model, ff
    vmax = max(D, F)
    keys = jax.random.split(key, 2 + num_layers)
    proj_w, proj_b = lin(keys[0], input_dim, D)
    fc_w, fc_b = lin(keys[1], D, 1)

    wqkv, wo, w1, w2, vecs = [], [], [], [], []
    ones, zeros = jnp.ones((D,), jnp.float32), jnp.zeros((D,), jnp.float32)
    for i in range(num_layers):
        kk = jax.random.split(keys[2 + i], 6)
        wq, bq = lin(kk[0], D, D)
        wk, bk = lin(kk[1], D, D)
        wv, bv = lin(kk[2], D, D)
        woi, bo = lin(kk[3], D, D)
        w1i, b1 = lin(kk[4], D, F)
        w2i, b2 = lin(kk[5], F, D)
        wqkv.append(jnp.stack([wq, wk, wv], axis=0))             # (3, D, D)
        wo.append(woi); w1.append(w1i); w2.append(w2i)
        rows = [bq, bk, bv, bo, ones, zeros, b1, b2, ones, zeros]
        vecs.append(jnp.stack([jnp.pad(r, (0, vmax - r.shape[0])) for r in rows]))

    return {
        'proj_w': proj_w, 'proj_b': proj_b[None, :],             # (d_in, D), (1, D)
        'fc_w': fc_w.T, 'fc_b': fc_b[None, :],                   # (1, D), (1, 1)
        'wqkv': jnp.stack(wqkv).astype(jnp.bfloat16),            # (L, 3, D, D) bf16
        'wo': jnp.stack(wo).astype(jnp.bfloat16),                # (L, D, D)    bf16
        'w1': jnp.stack(w1).astype(jnp.bfloat16),                # (L, D, F)    bf16
        'w2': jnp.stack(w2).astype(jnp.bfloat16),                # (L, F, D)    bf16
        'vecs': jnp.stack(vecs),                                 # (L, 10, max(D,F)) f32
    }


# ----------------------------- pure-JAX reference ------------------------------

def reference_forward(params, x, *, nhead):
    B, T, _ = x.shape
    D = params['proj_w'].shape[1]
    F = params['w1'].shape[2]
    L = params['wqkv'].shape[0]
    dh = D // nhead
    up = lambda a: a.astype(jnp.float32)
    vec = params['vecs']

    h = x @ params['proj_w'] + params['proj_b'] + positional_encoding(T, D)
    for i in range(L):
        q = h @ up(params['wqkv'][i, 0]) + vec[i, 0, :D]
        k = h @ up(params['wqkv'][i, 1]) + vec[i, 1, :D]
        v = h @ up(params['wqkv'][i, 2]) + vec[i, 2, :D]
        split = lambda z: z.reshape(B, T, nhead, dh).transpose(0, 2, 1, 3)
        qh, kh, vh = split(q), split(k), split(v)
        s = jnp.einsum('bhqd,bhkd->bhqk', qh, kh) / math.sqrt(dh)
        p = jax.nn.softmax(s, axis=-1)
        o = jnp.einsum('bhqk,bhkd->bhqd', p, vh).transpose(0, 2, 1, 3).reshape(B, T, D)
        attn = o @ up(params['wo'][i]) + vec[i, 3, :D]
        h1 = _layer_norm(h + attn, vec[i, 4, :D], vec[i, 5, :D])
        ff = jax.nn.gelu(h1 @ up(params['w1'][i]) + vec[i, 6, :F], approximate=False)
        ff = ff @ up(params['w2'][i]) + vec[i, 7, :D]
        h = _layer_norm(h1 + ff, vec[i, 8, :D], vec[i, 9, :D])
    return jnp.sum(h[:, -1] * params['fc_w'], axis=-1) + params['fc_b'][0, 0]


# ----------------------------- main -------------------------------------------

if __name__ == "__main__":
    B, T = 2, 8
    input_dim, d_model, nhead, num_layers, ff_dim = 6, 32, 4, 2, 64

    key = jax.random.PRNGKey(0)
    kx, kp = jax.random.split(key)
    x = jax.random.normal(kx, (B, T, input_dim), jnp.float32)
    params = init_params(kp, input_dim, d_model, nhead, num_layers, ff_dim)

    out = residual_transformer_forward(params, x, nhead=nhead)
    out = jax.block_until_ready(out)
    assert out.shape == (B,), out.shape

    ref = reference_forward(params, x, nhead=nhead)
    # Tolerance covers bf16 MXU operand rounding (residual stream / LN stats /
    # softmax stay f32) plus the approx reciprocal inside the erf polynomial.
    if not jnp.allclose(out, ref, rtol=2e-2, atol=2e-2):
        raise ValueError(f"mismatch: pallas={out} ref={ref}")

    print("KERNEL_OK")
</pallas_src>

<mosaic_0001>
module attributes {stable_mosaic.version = 11 : i64} {
  func.func @fused_transformer_kernel(%arg0: i32, %arg1: i32, %arg2: memref<2x8x6xf32, #tpu.memory_space<vmem>>, %arg3: memref<6x32xf32, #tpu.memory_space<vmem>>, %arg4: memref<1x32xf32, #tpu.memory_space<vmem>>, %arg5: memref<1x8x32xf32, #tpu.memory_space<vmem>>, %arg6: memref<1x3x32x32xbf16, #tpu.memory_space<vmem>>, %arg7: memref<1x32x32xbf16, #tpu.memory_space<vmem>>, %arg8: memref<1x32x64xbf16, #tpu.memory_space<vmem>>, %arg9: memref<1x64x32xbf16, #tpu.memory_space<vmem>>, %arg10: memref<1x10x64xf32, #tpu.memory_space<vmem>>, %arg11: memref<1x32xf32, #tpu.memory_space<vmem>>, %arg12: memref<1x1xf32, #tpu.memory_space<vmem>>, %arg13: memref<2x1xf32, #tpu.memory_space<vmem>>, %arg14: memref<16x32xf32, #tpu.memory_space<vmem>>, %arg15: memref<16x32xbf16, #tpu.memory_space<vmem>>) attributes {dimension_semantics = [#tpu.dimension_semantics<parallel>, #tpu.dimension_semantics<arbitrary>], iteration_bounds = array<i64: 1, 2>, scalar_prefetch = 0 : i64, scratch_operands = 2 : i64, tpu.core_type = #tpu.core_type<tc>, window_params = [{transform_indices = @transform_0, window_bounds = array<i64: 2, 8, 6>}, {pipeline_mode = #tpu.pipeline_mode<synchronous>, transform_indices = @transform_1, window_bounds = array<i64: 6, 32>}, {pipeline_mode = #tpu.pipeline_mode<synchronous>, transform_indices = @transform_2, window_bounds = array<i64: 1, 32>}, {pipeline_mode = #tpu.pipeline_mode<synchronous>, transform_indices = @transform_3, window_bounds = array<i64: 1, 8, 32>}, {transform_indices = @transform_4, window_bounds = array<i64: 1, 3, 32, 32>}, {transform_indices = @transform_5, window_bounds = array<i64: 1, 32, 32>}, {transform_indices = @transform_6, window_bounds = array<i64: 1, 32, 64>}, {transform_indices = @transform_7, window_bounds = array<i64: 1, 64, 32>}, {transform_indices = @transform_8, window_bounds = array<i64: 1, 10, 64>}, {pipeline_mode = #tpu.pipeline_mode<synchronous>, transform_indices = @transform_9, window_bounds = array<i64: 1, 32>}, {pipeline_mode = #tpu.pipeline_mode<synchronous>, transform_indices = @transform_10, window_bounds = array<i64: 1, 1>}, {transform_indices = @transform_11, window_bounds = array<i64: 2, 1>}]} {
    %c0_i32 = arith.constant 0 : i32
    %0 = arith.cmpi eq, %arg1, %c0_i32 : i32
    %1 = arith.extui %0 : i1 to i32
    %c0_i32_0 = arith.constant 0 : i32
    %2 = arith.cmpi ne, %1, %c0_i32_0 : i32
    scf.if %2 {
      %c0_102 = arith.constant 0 : index
      %c0_103 = arith.constant 0 : index
      %c0_104 = arith.constant 0 : index
      %224 = vector.load %arg2[%c0_102, %c0_103, %c0_104] : memref<2x8x6xf32, #tpu.memory_space<vmem>>, vector<2x8x6xf32>
      %225 = vector.shape_cast %224 : vector<2x8x6xf32> to vector<16x6xf32>
      %c0_105 = arith.constant 0 : index
      %c0_106 = arith.constant 0 : index
      %226 = vector.load %arg3[%c0_105, %c0_106] : memref<6x32xf32, #tpu.memory_space<vmem>>, vector<6x32xf32>
      %cst_107 = arith.constant dense<0.000000e+00> : vector<16x32xf32>
      %227 = tpu.matmul %225, %226, %cst_107 {dimension_numbers = #tpu.dot_dimension_numbers<[1], [0], [0], [1], [0, 0, 1, 1], [], []>} : vector<16x6xf32>, vector<6x32xf32>, vector<16x32xf32> -> vector<16x32xf32>
      %c0_108 = arith.constant 0 : index
      %c0_109 = arith.constant 0 : index
      %228 = vector.load %arg4[%c0_108, %c0_109] : memref<1x32xf32, #tpu.memory_space<vmem>>, vector<1x32xf32>
      %229 = vector.broadcast %228 : vector<1x32xf32> to vector<16x32xf32>
      %230 = arith.addf %227, %229 : vector<16x32xf32>
      %231 = vector.shape_cast %230 : vector<16x32xf32> to vector<2x8x32xf32>
      %c0_110 = arith.constant 0 : index
      %c0_111 = arith.constant 0 : index
      %c0_112 = arith.constant 0 : index
      %232 = vector.load %arg5[%c0_110, %c0_111, %c0_112] : memref<1x8x32xf32, #tpu.memory_space<vmem>>, vector<1x8x32xf32>
      %233 = vector.broadcast %232 : vector<1x8x32xf32> to vector<2x8x32xf32>
      %234 = arith.addf %231, %233 : vector<2x8x32xf32>
      %235 = vector.shape_cast %234 : vector<2x8x32xf32> to vector<16x32xf32>
      %c0_113 = arith.constant 0 : index
      %c0_114 = arith.constant 0 : index
      %236 = vector.load %arg14[%c0_113, %c0_114] : memref<16x32xf32, #tpu.memory_space<vmem>>, vector<16x32xf32>
      tpu.vector_store %arg14[%c0_113, %c0_114], %235 {strides = array<i32>} : memref<16x32xf32, #tpu.memory_space<vmem>>, vector<16x32xf32>,
    } else {
    }
    %c0 = arith.constant 0 : index
    %c0_1 = arith.constant 0 : index
    %3 = vector.load %arg14[%c0, %c0_1] : memref<16x32xf32, #tpu.memory_space<vmem>>, vector<16x32xf32>
    %4 = arith.truncf %3 : vector<16x32xf32> to vector<16x32xbf16>
    %c0_2 = arith.constant 0 : index
    %c0_3 = arith.constant 0 : index
    %c0_4 = arith.constant 0 : index
    %c0_5 = arith.constant 0 : index
    %5 = vector.load %arg6[%c0_2, %c0_3, %c0_4, %c0_5] : memref<1x3x32x32xbf16, #tpu.memory_space<vmem>>, vector<1x1x32x32xbf16>
    %6 = vector.shape_cast %5 : vector<1x1x32x32xbf16> to vector<32x32xbf16>
    %cst = arith.constant dense<0.000000e+00> : vector<16x32xf32>
    %7 = tpu.matmul %4, %6, %cst {dimension_numbers = #tpu.dot_dimension_numbers<[1], [0], [0], [1], [0, 0, 1, 1], [], []>} : vector<16x32xbf16>, vector<32x32xbf16>, vector<16x32xf32> -> vector<16x32xf32>
    %c0_6 = arith.constant 0 : index
    %c0_7 = arith.constant 0 : index
    %c0_8 = arith.constant 0 : index
    %8 = vector.load %arg10[%c0_6, %c0_7, %c0_8] : memref<1x10x64xf32, #tpu.memory_space<vmem>>, vector<1x1x32xf32>
    %9 = vector.shape_cast %8 : vector<1x1x32xf32> to vector<1x32xf32>
    %10 = vector.broadcast %9 : vector<1x32xf32> to vector<16x32xf32>
    %11 = arith.addf %7, %10 : vector<16x32xf32>
    %c0_9 = arith.constant 0 : index
    %c1 = arith.constant 1 : index
    %c0_10 = arith.constant 0 : index
    %c0_11 = arith.constant 0 : index
    %12 = vector.load %arg6[%c0_9, %c1, %c0_10, %c0_11] : memref<1x3x32x32xbf16, #tpu.memory_space<vmem>>, vector<1x1x32x32xbf16>
    %13 = vector.shape_cast %12 : vector<1x1x32x32xbf16> to vector<32x32xbf16>
    %cst_12 = arith.constant dense<0.000000e+00> : vector<16x32xf32>
    %14 = tpu.matmul %4, %13, %cst_12 {dimension_numbers = #tpu.dot_dimension_numbers<[1], [0], [0], [1], [0, 0, 1, 1], [], []>} : vector<16x32xbf16>, vector<32x32xbf16>, vector<16x32xf32> -> vector<16x32xf32>
    %c0_13 = arith.constant 0 : index
    %c1_14 = arith.constant 1 : index
    %c0_15 = arith.constant 0 : index
    %15 = vector.load %arg10[%c0_13, %c1_14, %c0_15] : memref<1x10x64xf32, #tpu.memory_space<vmem>>, vector<1x1x32xf32>
    %16 = vector.shape_cast %15 : vector<1x1x32xf32> to vector<1x32xf32>
    %17 = vector.broadcast %16 : vector<1x32xf32> to vector<16x32xf32>
    %18 = arith.addf %14, %17 : vector<16x32xf32>
    %c0_16 = arith.constant 0 : index
    %c2 = arith.constant 2 : index
    %c0_17 = arith.constant 0 : index
    %c0_18 = arith.constant 0 : index
    %19 = vector.load %arg6[%c0_16, %c2, %c0_17, %c0_18] : memref<1x3x32x32xbf16, #tpu.memory_space<vmem>>, vector<1x1x32x32xbf16>
    %20 = vector.shape_cast %19 : vector<1x1x32x32xbf16> to vector<32x32xbf16>
    %cst_19 = arith.constant dense<0.000000e+00> : vector<16x32xf32>
    %21 = tpu.matmul %4, %20, %cst_19 {dimension_numbers = #tpu.dot_dimension_numbers<[1], [0], [0], [1], [0, 0, 1, 1], [], []>} : vector<16x32xbf16>, vector<32x32xbf16>, vector<16x32xf32> -> vector<16x32xf32>
    %c0_20 = arith.constant 0 : index
    %c2_21 = arith.constant 2 : index
    %c0_22 = arith.constant 0 : index
    %22 = vector.load %arg10[%c0_20, %c2_21, %c0_22] : memref<1x10x64xf32, #tpu.memory_space<vmem>>, vector<1x1x32xf32>
    %23 = vector.shape_cast %22 : vector<1x1x32xf32> to vector<1x32xf32>
    %24 = vector.broadcast %23 : vector<1x32xf32> to vector<16x32xf32>
    %25 = arith.addf %21, %24 : vector<16x32xf32>
    %cst_23 = arith.constant 0.353553385 : f32
    %26 = vector.broadcast %cst_23 : f32 to vector<16x32xf32>
    %27 = arith.mulf %11, %26 : vector<16x32xf32>
    %28 = arith.truncf %27 : vector<16x32xf32> to vector<16x32xbf16>
    %29 = vector.shape_cast %28 : vector<16x32xbf16> to vector<2x8x32xbf16>
    %30 = arith.truncf %18 : vector<16x32xf32> to vector<16x32xbf16>
    %31 = vector.shape_cast %30 : vector<16x32xbf16> to vector<2x8x32xbf16>
    %32 = arith.truncf %25 : vector<16x32xf32> to vector<16x32xbf16>
    %33 = vector.shape_cast %32 : vector<16x32xbf16> to vector<2x8x32xbf16>
    %34 = vector.extract_strided_slice %29 {offsets = [0, 0, 0], sizes = [2, 8, 8], strides = [1, 1, 1]} : vector<2x8x32xbf16> to vector<2x8x8xbf16>
    %35 = vector.extract_strided_slice %31 {offsets = [0, 0, 0], sizes = [2, 8, 8], strides = [1, 1, 1]} : vector<2x8x32xbf16> to vector<2x8x8xbf16>
    "tpu.trace_start"() <{level = 10 : i32, message = "bqd,bkd->bqk"}> : () -> ()
    %cst_24 = arith.constant dense<0.000000e+00> : vector<2x8x8xf32>
    %36 = tpu.matmul %34, %35, %cst_24 {dimension_numbers = #tpu.dot_dimension_numbers<[2], [2], [1], [1], [0, 0, 0, 1, 1, 1], [0], [0]>} : vector<2x8x8xbf16>, vector<2x8x8xbf16>, vector<2x8x8xf32> -> vector<2x8x8xf32>
    "tpu.trace_stop"() : () -> ()
    %cst_25 = arith.constant dense<0xFF800000> : vector<2x8xf32>
    %37 = vector.multi_reduction <maximumf>, %36, %cst_25 [2] : vector<2x8x8xf32> to vector<2x8xf32>
    %38 = vector.shape_cast %37 : vector<2x8xf32> to vector<2x8x1xf32>
    %39 = vector.broadcast %38 : vector<2x8x1xf32> to vector<2x8x8xf32>
    %40 = arith.subf %36, %39 : vector<2x8x8xf32>
    %41 = math.exp %40 : vector<2x8x8xf32>
    %cst_26 = arith.constant dense<0.000000e+00> : vector<2x8xf32>
    %42 = vector.multi_reduction <add>, %41, %cst_26 [2] : vector<2x8x8xf32> to vector<2x8xf32>
    %43 = vector.shape_cast %42 : vector<2x8xf32> to vector<2x8x1xf32>
    %44 = vector.broadcast %43 : vector<2x8x1xf32> to vector<2x8x8xf32>
    %45 = arith.divf %41, %44 : vector<2x8x8xf32>
    %46 = arith.truncf %45 : vector<2x8x8xf32> to vector<2x8x8xbf16>
    %47 = vector.extract_strided_slice %33 {offsets = [0, 0, 0], sizes = [2, 8, 8], strides = [1, 1, 1]} : vector<2x8x32xbf16> to vector<2x8x8xbf16>
    "tpu.trace_start"() <{level = 10 : i32, message = "bqk,bkd->bqd"}> : () -> ()
    %cst_27 = arith.constant dense<0.000000e+00> : vector<2x8x8xf32>
    %48 = tpu.matmul %46, %47, %cst_27 {dimension_numbers = #tpu.dot_dimension_numbers<[2], [1], [1], [2], [0, 0, 0, 1, 1, 2], [0], [0]>} : vector<2x8x8xbf16>, vector<2x8x8xbf16>, vector<2x8x8xf32> -> vector<2x8x8xf32>
    "tpu.trace_stop"() : () -> ()
    %49 = vector.shape_cast %48 : vector<2x8x8xf32> to vector<16x8xf32>
    %50 = arith.truncf %49 : vector<16x8xf32> to vector<16x8xbf16>
    %c0_28 = arith.constant 0 : index
    %c0_29 = arith.constant 0 : index
    %51 = vector.load %arg15[%c0_28, %c0_29] : memref<16x32xbf16, #tpu.memory_space<vmem>>, vector<16x8xbf16>
    tpu.vector_store %arg15[%c0_28, %c0_29], %50 {strides = array<i32>} : memref<16x32xbf16, #tpu.memory_space<vmem>>, vector<16x8xbf16>,
    %52 = vector.extract_strided_slice %29 {offsets = [0, 0, 8], sizes = [2, 8, 8], strides = [1, 1, 1]} : vector<2x8x32xbf16> to vector<2x8x8xbf16>
    %53 = vector.extract_strided_slice %31 {offsets = [0, 0, 8], sizes = [2, 8, 8], strides = [1, 1, 1]} : vector<2x8x32xbf16> to vector<2x8x8xbf16>
    "tpu.trace_start"() <{level = 10 : i32, message = "bqd,bkd->bqk"}> : () -> ()
    %cst_30 = arith.constant dense<0.000000e+00> : vector<2x8x8xf32>
    %54 = tpu.matmul %52, %53, %cst_30 {dimension_numbers = #tpu.dot_dimension_numbers<[2], [2], [1], [1], [0, 0, 0, 1, 1, 1], [0], [0]>} : vector<2x8x8xbf16>, vector<2x8x8xbf16>, vector<2x8x8xf32> -> vector<2x8x8xf32>
    "tpu.trace_stop"() : () -> ()
    %cst_31 = arith.constant dense<0xFF800000> : vector<2x8xf32>
    %55 = vector.multi_reduction <maximumf>, %54, %cst_31 [2] : vector<2x8x8xf32> to vector<2x8xf32>
    %56 = vector.shape_cast %55 : vector<2x8xf32> to vector<2x8x1xf32>
    %57 = vector.broadcast %56 : vector<2x8x1xf32> to vector<2x8x8xf32>
    %58 = arith.subf %54, %57 : vector<2x8x8xf32>
    %59 = math.exp %58 : vector<2x8x8xf32>
    %cst_32 = arith.constant dense<0.000000e+00> : vector<2x8xf32>
    %60 = vector.multi_reduction <add>, %59, %cst_32 [2] : vector<2x8x8xf32> to vector<2x8xf32>
    %61 = vector.shape_cast %60 : vector<2x8xf32> to vector<2x8x1xf32>
    %62 = vector.broadcast %61 : vector<2x8x1xf32> to vector<2x8x8xf32>
    %63 = arith.divf %59, %62 : vector<2x8x8xf32>
    %64 = arith.truncf %63 : vector<2x8x8xf32> to vector<2x8x8xbf16>
    %65 = vector.extract_strided_slice %33 {offsets = [0, 0, 8], sizes = [2, 8, 8], strides = [1, 1, 1]} : vector<2x8x32xbf16> to vector<2x8x8xbf16>
    "tpu.trace_start"() <{level = 10 : i32, message = "bqk,bkd->bqd"}> : () -> ()
    %cst_33 = arith.constant dense<0.000000e+00> : vector<2x8x8xf32>
    %66 = tpu.matmul %64, %65, %cst_33 {dimension_numbers = #tpu.dot_dimension_numbers<[2], [1], [1], [2], [0, 0, 0, 1, 1, 2], [0], [0]>} : vector<2x8x8xbf16>, vector<2x8x8xbf16>, vector<2x8x8xf32> -> vector<2x8x8xf32>
    "tpu.trace_stop"() : () -> ()
    %67 = vector.shape_cast %66 : vector<2x8x8xf32> to vector<16x8xf32>
    %68 = arith.truncf %67 : vector<16x8xf32> to vector<16x8xbf16>
    %c0_34 = arith.constant 0 : index
    %c8 = arith.constant 8 : index
    %69 = vector.load %arg15[%c0_34, %c8] : memref<16x32xbf16, #tpu.memory_space<vmem>>, vector<16x8xbf16>
    tpu.vector_store %arg15[%c0_34, %c8], %68 {strides = array<i32>} : memref<16x32xbf16, #tpu.memory_space<vmem>>, vector<16x8xbf16>,
    %70 = vector.extract_strided_slice %29 {offsets = [0, 0, 16], sizes = [2, 8, 8], strides = [1, 1, 1]} : vector<2x8x32xbf16> to vector<2x8x8xbf16>
    %71 = vector.extract_strided_slice %31 {offsets = [0, 0, 16], sizes = [2, 8, 8], strides = [1, 1, 1]} : vector<2x8x32xbf16> to vector<2x8x8xbf16>
    "tpu.trace_start"() <{level = 10 : i32, message = "bqd,bkd->bqk"}> : () -> ()
    %cst_35 = arith.constant dense<0.000000e+00> : vector<2x8x8xf32>
    %72 = tpu.matmul %70, %71, %cst_35 {dimension_numbers = #tpu.dot_dimension_numbers<[2], [2], [1], [1], [0, 0, 0, 1, 1, 1], [0], [0]>} : vector<2x8x8xbf16>, vector<2x8x8xbf16>, vector<2x8x8xf32> -> vector<2x8x8xf32>
    "tpu.trace_stop"() : () -> ()
    %cst_36 = arith.constant dense<0xFF800000> : vector<2x8xf32>
    %73 = vector.multi_reduction <maximumf>, %72, %cst_36 [2] : vector<2x8x8xf32> to vector<2x8xf32>
    %74 = vector.shape_cast %73 : vector<2x8xf32> to vector<2x8x1xf32>
    %75 = vector.broadcast %74 : vector<2x8x1xf32> to vector<2x8x8xf32>
    %76 = arith.subf %72, %75 : vector<2x8x8xf32>
    %77 = math.exp %76 : vector<2x8x8xf32>
    %cst_37 = arith.constant dense<0.000000e+00> : vector<2x8xf32>
    %78 = vector.multi_reduction <add>, %77, %cst_37 [2] : vector<2x8x8xf32> to vector<2x8xf32>
    %79 = vector.shape_cast %78 : vector<2x8xf32> to vector<2x8x1xf32>
    %80 = vector.broadcast %79 : vector<2x8x1xf32> to vector<2x8x8xf32>
    %81 = arith.divf %77, %80 : vector<2x8x8xf32>
    %82 = arith.truncf %81 : vector<2x8x8xf32> to vector<2x8x8xbf16>
    %83 = vector.extract_strided_slice %33 {offsets = [0, 0, 16], sizes = [2, 8, 8], strides = [1, 1, 1]} : vector<2x8x32xbf16> to vector<2x8x8xbf16>
    "tpu.trace_start"() <{level = 10 : i32, message = "bqk,bkd->bqd"}> : () -> ()
    %cst_38 = arith.constant dense<0.000000e+00> : vector<2x8x8xf32>
    %84 = tpu.matmul %82, %83, %cst_38 {dimension_numbers = #tpu.dot_dimension_numbers<[2], [1], [1], [2], [0, 0, 0, 1, 1, 2], [0], [0]>} : vector<2x8x8xbf16>, vector<2x8x8xbf16>, vector<2x8x8xf32> -> vector<2x8x8xf32>
    "tpu.trace_stop"() : () -> ()
    %85 = vector.shape_cast %84 : vector<2x8x8xf32> to vector<16x8xf32>
    %86 = arith.truncf %85 : vector<16x8xf32> to vector<16x8xbf16>
    %c0_39 = arith.constant 0 : index
    %c16 = arith.constant 16 : index
    %87 = vector.load %arg15[%c0_39, %c16] : memref<16x32xbf16, #tpu.memory_space<vmem>>, vector<16x8xbf16>
    tpu.vector_store %arg15[%c0_39, %c16], %86 {strides = array<i32>} : memref<16x32xbf16, #tpu.memory_space<vmem>>, vector<16x8xbf16>,
    %88 = vector.extract_strided_slice %29 {offsets = [0, 0, 24], sizes = [2, 8, 8], strides = [1, 1, 1]} : vector<2x8x32xbf16> to vector<2x8x8xbf16>
    %89 = vector.extract_strided_slice %31 {offsets = [0, 0, 24], sizes = [2, 8, 8], strides = [1, 1, 1]} : vector<2x8x32xbf16> to vector<2x8x8xbf16>
    "tpu.trace_start"() <{level = 10 : i32, message = "bqd,bkd->bqk"}> : () -> ()
    %cst_40 = arith.constant dense<0.000000e+00> : vector<2x8x8xf32>
    %90 = tpu.matmul %88, %89, %cst_40 {dimension_numbers = #tpu.dot_dimension_numbers<[2], [2], [1], [1], [0, 0, 0, 1, 1, 1], [0], [0]>} : vector<2x8x8xbf16>, vector<2x8x8xbf16>, vector<2x8x8xf32> -> vector<2x8x8xf32>
    "tpu.trace_stop"() : () -> ()
    %cst_41 = arith.constant dense<0xFF800000> : vector<2x8xf32>
    %91 = vector.multi_reduction <maximumf>, %90, %cst_41 [2] : vector<2x8x8xf32> to vector<2x8xf32>
    %92 = vector.shape_cast %91 : vector<2x8xf32> to vector<2x8x1xf32>
    %93 = vector.broadcast %92 : vector<2x8x1xf32> to vector<2x8x8xf32>
    %94 = arith.subf %90, %93 : vector<2x8x8xf32>
    %95 = math.exp %94 : vector<2x8x8xf32>
    %cst_42 = arith.constant dense<0.000000e+00> : vector<2x8xf32>
    %96 = vector.multi_reduction <add>, %95, %cst_42 [2] : vector<2x8x8xf32> to vector<2x8xf32>
    %97 = vector.shape_cast %96 : vector<2x8xf32> to vector<2x8x1xf32>
    %98 = vector.broadcast %97 : vector<2x8x1xf32> to vector<2x8x8xf32>
    %99 = arith.divf %95, %98 : vector<2x8x8xf32>
    %100 = arith.truncf %99 : vector<2x8x8xf32> to vector<2x8x8xbf16>
    %101 = vector.extract_strided_slice %33 {offsets = [0, 0, 24], sizes = [2, 8, 8], strides = [1, 1, 1]} : vector<2x8x32xbf16> to vector<2x8x8xbf16>
    "tpu.trace_start"() <{level = 10 : i32, message = "bqk,bkd->bqd"}> : () -> ()
    %cst_43 = arith.constant dense<0.000000e+00> : vector<2x8x8xf32>
    %102 = tpu.matmul %100, %101, %cst_43 {dimension_numbers = #tpu.dot_dimension_numbers<[2], [1], [1], [2], [0, 0, 0, 1, 1, 2], [0], [0]>} : vector<2x8x8xbf16>, vector<2x8x8xbf16>, vector<2x8x8xf32> -> vector<2x8x8xf32>
    "tpu.trace_stop"() : () -> ()
    %103 = vector.shape_cast %102 : vector<2x8x8xf32> to vector<16x8xf32>
    %104 = arith.truncf %103 : vector<16x8xf32> to vector<16x8xbf16>
    %c0_44 = arith.constant 0 : index
    %c24 = arith.constant 24 : index
    %105 = vector.load %arg15[%c0_44, %c24] : memref<16x32xbf16, #tpu.memory_space<vmem>>, vector<16x8xbf16>
    tpu.vector_store %arg15[%c0_44, %c24], %104 {strides = array<i32>} : memref<16x32xbf16, #tpu.memory_space<vmem>>, vector<16x8xbf16>,
    %c0_45 = arith.constant 0 : index
    %c0_46 = arith.constant 0 : index
    %106 = vector.load %arg15[%c0_45, %c0_46] : memref<16x32xbf16, #tpu.memory_space<vmem>>, vector<16x32xbf16>
    %c0_47 = arith.constant 0 : index
    %c0_48 = arith.constant 0 : index
    %c0_49 = arith.constant 0 : index
    %107 = vector.load %arg7[%c0_47, %c0_48, %c0_49] : memref<1x32x32xbf16, #tpu.memory_space<vmem>>, vector<1x32x32xbf16>
    %108 = vector.shape_cast %107 : vector<1x32x32xbf16> to vector<32x32xbf16>
    %cst_50 = arith.constant dense<0.000000e+00> : vector<16x32xf32>
    %109 = tpu.matmul %106, %108, %cst_50 {dimension_numbers = #tpu.dot_dimension_numbers<[1], [0], [0], [1], [0, 0, 1, 1], [], []>} : vector<16x32xbf16>, vector<32x32xbf16>, vector<16x32xf32> -> vector<16x32xf32>
    %c0_51 = arith.constant 0 : index
    %c3 = arith.constant 3 : index
    %c0_52 = arith.constant 0 : index
    %110 = vector.load %arg10[%c0_51, %c3, %c0_52] : memref<1x10x64xf32, #tpu.memory_space<vmem>>, vector<1x1x32xf32>
    %111 = vector.shape_cast %110 : vector<1x1x32xf32> to vector<1x32xf32>
    %112 = vector.broadcast %111 : vector<1x32xf32> to vector<16x32xf32>
    %113 = arith.addf %109, %112 : vector<16x32xf32>
    %114 = arith.addf %3, %113 : vector<16x32xf32>
    %c0_53 = arith.constant 0 : index
    %c4 = arith.constant 4 : index
    %c0_54 = arith.constant 0 : index
    %115 = vector.load %arg10[%c0_53, %c4, %c0_54] : memref<1x10x64xf32, #tpu.memory_space<vmem>>, vector<1x1x32xf32>
    %116 = vector.shape_cast %115 : vector<1x1x32xf32> to vector<1x32xf32>
    %c0_55 = arith.constant 0 : index
    %c5 = arith.constant 5 : index
    %c0_56 = arith.constant 0 : index
    %117 = vector.load %arg10[%c0_55, %c5, %c0_56] : memref<1x10x64xf32, #tpu.memory_space<vmem>>, vector<1x1x32xf32>
    %118 = vector.shape_cast %117 : vector<1x1x32xf32> to vector<1x32xf32>
    %cst_57 = arith.constant dense<0.000000e+00> : vector<16xf32>
    %119 = vector.multi_reduction <add>, %114, %cst_57 [1] : vector<16x32xf32> to vector<16xf32>
    %120 = vector.shape_cast %119 : vector<16xf32> to vector<16x1xf32>
    %cst_58 = arith.constant 3.200000e+01 : f32
    %121 = vector.broadcast %cst_58 : f32 to vector<16x1xf32>
    %122 = arith.divf %120, %121 : vector<16x1xf32>
    %123 = vector.broadcast %122 : vector<16x1xf32> to vector<16x32xf32>
    %124 = arith.subf %114, %123 : vector<16x32xf32>
    %125 = arith.mulf %124, %124 : vector<16x32xf32>
    %cst_59 = arith.constant dense<0.000000e+00> : vector<16xf32>
    %126 = vector.multi_reduction <add>, %125, %cst_59 [1] : vector<16x32xf32> to vector<16xf32>
    %127 = vector.shape_cast %126 : vector<16xf32> to vector<16x1xf32>
    %cst_60 = arith.constant 3.200000e+01 : f32
    %128 = vector.broadcast %cst_60 : f32 to vector<16x1xf32>
    %129 = arith.divf %127, %128 : vector<16x1xf32>
    %cst_61 = arith.constant 9.99999974E-6 : f32
    %130 = vector.broadcast %cst_61 : f32 to vector<16x1xf32>
    %131 = arith.addf %129, %130 : vector<16x1xf32>
    %132 = math.rsqrt %131 : vector<16x1xf32>
    %133 = vector.broadcast %132 : vector<16x1xf32> to vector<16x32xf32>
    %134 = arith.mulf %124, %133 : vector<16x32xf32>
    %135 = vector.broadcast %116 : vector<1x32xf32> to vector<16x32xf32>
    %136 = arith.mulf %134, %135 : vector<16x32xf32>
    %137 = vector.broadcast %118 : vector<1x32xf32> to vector<16x32xf32>
    %138 = arith.addf %136, %137 : vector<16x32xf32>
    %139 = arith.truncf %138 : vector<16x32xf32> to vector<16x32xbf16>
    %c0_62 = arith.constant 0 : index
    %c0_63 = arith.constant 0 : index
    %c0_64 = arith.constant 0 : index
    %140 = vector.load %arg8[%c0_62, %c0_63, %c0_64] : memref<1x32x64xbf16, #tpu.memory_space<vmem>>, vector<1x32x64xbf16>
    %141 = vector.shape_cast %140 : vector<1x32x64xbf16> to vector<32x64xbf16>
    %cst_65 = arith.constant dense<0.000000e+00> : vector<16x64xf32>
    %142 = tpu.matmul %139, %141, %cst_65 {dimension_numbers = #tpu.dot_dimension_numbers<[1], [0], [0], [1], [0, 0, 1, 1], [], []>} : vector<16x32xbf16>, vector<32x64xbf16>, vector<16x64xf32> -> vector<16x64xf32>
    %c0_66 = arith.constant 0 : index
    %c6 = arith.constant 6 : index
    %c0_67 = arith.constant 0 : index
    %143 = vector.load %arg10[%c0_66, %c6, %c0_67] : memref<1x10x64xf32, #tpu.memory_space<vmem>>, vector<1x1x64xf32>
    %144 = vector.shape_cast %143 : vector<1x1x64xf32> to vector<1x64xf32>
    %145 = vector.broadcast %144 : vector<1x64xf32> to vector<16x64xf32>
    %146 = arith.addf %142, %145 : vector<16x64xf32>
    %cst_68 = arith.constant 5.000000e-01 : f32
    %147 = vector.broadcast %cst_68 : f32 to vector<16x64xf32>
    %148 = arith.mulf %147, %146 : vector<16x64xf32>
    %cst_69 = arith.constant 0.707106769 : f32
    %149 = vector.broadcast %cst_69 : f32 to vector<16x64xf32>
    %150 = arith.mulf %146, %149 : vector<16x64xf32>
    %cst_70 = arith.constant 0.000000e+00 : f32
    %151 = vector.broadcast %cst_70 : f32 to vector<16x64xf32>
    %152 = arith.cmpf oge, %150, %151 : vector<16x64xf32>
    %cst_71 = arith.constant 1.000000e+00 : f32
    %cst_72 = arith.constant -1.000000e+00 : f32
    %153 = vector.broadcast %cst_71 : f32 to vector<16x64xf32>
    %154 = vector.broadcast %cst_72 : f32 to vector<16x64xf32>
    %155 = arith.select %152, %153, %154 : vector<16x64xi1>, vector<16x64xf32>
    %156 = math.absf %150 : vector<16x64xf32>
    %cst_73 = arith.constant 0.327591091 : f32
    %157 = vector.broadcast %cst_73 : f32 to vector<16x64xf32>
    %158 = arith.mulf %157, %156 : vector<16x64xf32>
    %cst_74 = arith.constant 1.000000e+00 : f32
    %159 = vector.broadcast %cst_74 : f32 to vector<16x64xf32>
    %160 = arith.addf %159, %158 : vector<16x64xf32>
    %161 = tpu.reciprocal %160 {approx = true} : vector<16x64xf32> -> vector<16x64xf32>
    %cst_75 = arith.constant 1.06140542 : f32
    %162 = vector.broadcast %cst_75 : f32 to vector<16x64xf32>
    %163 = arith.mulf %162, %161 : vector<16x64xf32>
    %cst_76 = arith.constant -1.45315206 : f32
    %164 = vector.broadcast %cst_76 : f32 to vector<16x64xf32>
    %165 = arith.addf %163, %164 : vector<16x64xf32>
    %166 = arith.mulf %165, %161 : vector<16x64xf32>
    %cst_77 = arith.constant 1.42141378 : f32
    %167 = vector.broadcast %cst_77 : f32 to vector<16x64xf32>
    %168 = arith.addf %166, %167 : vector<16x64xf32>
    %169 = arith.mulf %168, %161 : vector<16x64xf32>
    %cst_78 = arith.constant -0.284496725 : f32
    %170 = vector.broadcast %cst_78 : f32 to vector<16x64xf32>
    %171 = arith.addf %169, %170 : vector<16x64xf32>
    %172 = arith.mulf %171, %161 : vector<16x64xf32>
    %cst_79 = arith.constant 0.254829586 : f32
    %173 = vector.broadcast %cst_79 : f32 to vector<16x64xf32>
    %174 = arith.addf %172, %173 : vector<16x64xf32>
    %175 = arith.mulf %174, %161 : vector<16x64xf32>
    %cst_80 = arith.constant 0.000000e+00 : f32
    %176 = vector.broadcast %cst_80 : f32 to vector<16x64xf32>
    %177 = arith.subf %176, %156 : vector<16x64xf32>
    %178 = arith.mulf %177, %156 : vector<16x64xf32>
    %179 = math.exp %178 : vector<16x64xf32>
    %180 = arith.mulf %175, %179 : vector<16x64xf32>
    %cst_81 = arith.constant 1.000000e+00 : f32
    %181 = vector.broadcast %cst_81 : f32 to vector<16x64xf32>
    %182 = arith.subf %181, %180 : vector<16x64xf32>
    %183 = arith.mulf %155, %182 : vector<16x64xf32>
    %cst_82 = arith.constant 1.000000e+00 : f32
    %184 = vector.broadcast %cst_82 : f32 to vector<16x64xf32>
    %185 = arith.addf %184, %183 : vector<16x64xf32>
    %186 = arith.mulf %148, %185 : vector<16x64xf32>
    %187 = arith.truncf %186 : vector<16x64xf32> to vector<16x64xbf16>
    %c0_83 = arith.constant 0 : index
    %c0_84 = arith.constant 0 : index
    %c0_85 = arith.constant 0 : index
    %188 = vector.load %arg9[%c0_83, %c0_84, %c0_85] : memref<1x64x32xbf16, #tpu.memory_space<vmem>>, vector<1x64x32xbf16>
    %189 = vector.shape_cast %188 : vector<1x64x32xbf16> to vector<64x32xbf16>
    %cst_86 = arith.constant dense<0.000000e+00> : vector<16x32xf32>
    %190 = tpu.matmul %187, %189, %cst_86 {dimension_numbers = #tpu.dot_dimension_numbers<[1], [0], [0], [1], [0, 0, 1, 1], [], []>} : vector<16x64xbf16>, vector<64x32xbf16>, vector<16x32xf32> -> vector<16x32xf32>
    %c0_87 = arith.constant 0 : index
    %c7 = arith.constant 7 : index
    %c0_88 = arith.constant 0 : index
    %191 = vector.load %arg10[%c0_87, %c7, %c0_88] : memref<1x10x64xf32, #tpu.memory_space<vmem>>, vector<1x1x32xf32>
    %192 = vector.shape_cast %191 : vector<1x1x32xf32> to vector<1x32xf32>
    %193 = vector.broadcast %192 : vector<1x32xf32> to vector<16x32xf32>
    %194 = arith.addf %190, %193 : vector<16x32xf32>
    %195 = arith.addf %138, %194 : vector<16x32xf32>
    %c0_89 = arith.constant 0 : index
    %c8_90 = arith.constant 8 : index
    %c0_91 = arith.constant 0 : index
    %196 = vector.load %arg10[%c0_89, %c8_90, %c0_91] : memref<1x10x64xf32, #tpu.memory_space<vmem>>, vector<1x1x32xf32>
    %197 = vector.shape_cast %196 : vector<1x1x32xf32> to vector<1x32xf32>
    %c0_92 = arith.constant 0 : index
    %c9 = arith.constant 9 : index
    %c0_93 = arith.constant 0 : index
    %198 = vector.load %arg10[%c0_92, %c9, %c0_93] : memref<1x10x64xf32, #tpu.memory_space<vmem>>, vector<1x1x32xf32>
    %199 = vector.shape_cast %198 : vector<1x1x32xf32> to vector<1x32xf32>
    %cst_94 = arith.constant dense<0.000000e+00> : vector<16xf32>
    %200 = vector.multi_reduction <add>, %195, %cst_94 [1] : vector<16x32xf32> to vector<16xf32>
    %201 = vector.shape_cast %200 : vector<16xf32> to vector<16x1xf32>
    %cst_95 = arith.constant 3.200000e+01 : f32
    %202 = vector.broadcast %cst_95 : f32 to vector<16x1xf32>
    %203 = arith.divf %201, %202 : vector<16x1xf32>
    %204 = vector.broadcast %203 : vector<16x1xf32> to vector<16x32xf32>
    %205 = arith.subf %195, %204 : vector<16x32xf32>
    %206 = arith.mulf %205, %205 : vector<16x32xf32>
    %cst_96 = arith.constant dense<0.000000e+00> : vector<16xf32>
    %207 = vector.multi_reduction <add>, %206, %cst_96 [1] : vector<16x32xf32> to vector<16xf32>
    %208 = vector.shape_cast %207 : vector<16xf32> to vector<16x1xf32>
    %cst_97 = arith.constant 3.200000e+01 : f32
    %209 = vector.broadcast %cst_97 : f32 to vector<16x1xf32>
    %210 = arith.divf %208, %209 : vector<16x1xf32>
    %cst_98 = arith.constant 9.99999974E-6 : f32
    %211 = vector.broadcast %cst_98 : f32 to vector<16x1xf32>
    %212 = arith.addf %210, %211 : vector<16x1xf32>
    %213 = math.rsqrt %212 : vector<16x1xf32>
    %214 = vector.broadcast %213 : vector<16x1xf32> to vector<16x32xf32>
    %215 = arith.mulf %205, %214 : vector<16x32xf32>
    %216 = vector.broadcast %197 : vector<1x32xf32> to vector<16x32xf32>
    %217 = arith.mulf %215, %216 : vector<16x32xf32>
    %218 = vector.broadcast %199 : vector<1x32xf32> to vector<16x32xf32>
    %219 = arith.addf %217, %218 : vector<16x32xf32>
    %c0_99 = arith.constant 0 : index
    %c0_100 = arith.constant 0 : index
    %220 = vector.load %arg14[%c0_99, %c0_100] : memref<16x32xf32, #tpu.memory_space<vmem>>, vector<16x32xf32>
    tpu.vector_store %arg14[%c0_99, %c0_100], %219 {strides = array<i32>} : memref<16x32xf32, #tpu.memory_space<vmem>>, vector<16x32xf32>,
    %c1_i32 = arith.constant 1 : i32
    %221 = arith.cmpi eq, %arg1, %c1_i32 : i32
    %222 = arith.extui %221 : i1 to i32
    %c0_i32_101 = arith.constant 0 : i32
    %223 = arith.cmpi ne, %222, %c0_i32_101 : i32
    scf.if %223 {
      %224 = vector.shape_cast %219 : vector<16x32xf32> to vector<2x8x32xf32>
      %225 = vector.extract_strided_slice %224 {offsets = [0, 7, 0], sizes = [2, 1, 32], strides = [1, 1, 1]} : vector<2x8x32xf32> to vector<2x1x32xf32>
      %226 = vector.shape_cast %225 : vector<2x1x32xf32> to vector<2x32xf32>
      %c0_102 = arith.constant 0 : index
      %c0_103 = arith.constant 0 : index
      %227 = vector.load %arg11[%c0_102, %c0_103] : memref<1x32xf32, #tpu.memory_space<vmem>>, vector<1x32xf32>
      %228 = vector.broadcast %227 : vector<1x32xf32> to vector<2x32xf32>
      %229 = arith.mulf %226, %228 : vector<2x32xf32>
      %cst_104 = arith.constant dense<0.000000e+00> : vector<2xf32>
      %230 = vector.multi_reduction <add>, %229, %cst_104 [1] : vector<2x32xf32> to vector<2xf32>
      %231 = vector.shape_cast %230 : vector<2xf32> to vector<2x1xf32>
      %c0_105 = arith.constant 0 : index
      %c0_106 = arith.constant 0 : index
      %232 = vector.load %arg12[%c0_105, %c0_106] : memref<1x1xf32, #tpu.memory_space<vmem>>, vector<1x1xf32>
      %233 = vector.broadcast %232 : vector<1x1xf32> to vector<2x1xf32>
      %234 = arith.addf %231, %233 : vector<2x1xf32>
      %c0_107 = arith.constant 0 : index
      %c0_108 = arith.constant 0 : index
      %235 = vector.load %arg13[%c0_107, %c0_108] : memref<2x1xf32, #tpu.memory_space<vmem>>, vector<2x1xf32>
      tpu.vector_store %arg13[%c0_107, %c0_108], %234 {strides = array<i32>} : memref<2x1xf32, #tpu.memory_space<vmem>>, vector<2x1xf32>,
    } else {
    }
    return
  }
  func.func @transform_0(%arg0: i32, %arg1: i32) -> (i32, i32, i32) {
    %c0_i32 = arith.constant 0 : i32
    %c0_i32_0 = arith.constant 0 : i32
    %c0_i32_1 = arith.constant 0 : i32
    return %arg0, %c0_i32, %c0_i32_0 : i32, i32, i32
  }
  func.func @transform_1(%arg0: i32, %arg1: i32) -> (i32, i32) {
    %c0_i32 = arith.constant 0 : i32
    %c0_i32_0 = arith.constant 0 : i32
    %c0_i32_1 = arith.constant 0 : i32
    return %c0_i32, %c0_i32_0 : i32, i32
  }
  func.func @transform_2(%arg0: i32, %arg1: i32) -> (i32, i32) {
    %c0_i32 = arith.constant 0 : i32
    %c0_i32_0 = arith.constant 0 : i32
    %c0_i32_1 = arith.constant 0 : i32
    return %c0_i32, %c0_i32_0 : i32, i32
  }
  func.func @transform_3(%arg0: i32, %arg1: i32) -> (i32, i32, i32) {
    %c0_i32 = arith.constant 0 : i32
    %c0_i32_0 = arith.constant 0 : i32
    %c0_i32_1 = arith.constant 0 : i32
    %c0_i32_2 = arith.constant 0 : i32
    return %c0_i32, %c0_i32_0, %c0_i32_1 : i32, i32, i32
  }
  func.func @transform_4(%arg0: i32, %arg1: i32) -> (i32, i32, i32, i32) {
    %c0_i32 = arith.constant 0 : i32
    %c0_i32_0 = arith.constant 0 : i32
    %c0_i32_1 = arith.constant 0 : i32
    %c0_i32_2 = arith.constant 0 : i32
    return %arg1, %c0_i32, %c0_i32_0, %c0_i32_1 : i32, i32, i32, i32
  }
  func.func @transform_5(%arg0: i32, %arg1: i32) -> (i32, i32, i32) {
    %c0_i32 = arith.constant 0 : i32
    %c0_i32_0 = arith.constant 0 : i32
    %c0_i32_1 = arith.constant 0 : i32
    return %arg1, %c0_i32, %c0_i32_0 : i32, i32, i32
  }
  func.func @transform_6(%arg0: i32, %arg1: i32) -> (i32, i32, i32) {
    %c0_i32 = arith.constant 0 : i32
    %c0_i32_0 = arith.constant 0 : i32
    %c0_i32_1 = arith.constant 0 : i32
    return %arg1, %c0_i32, %c0_i32_0 : i32, i32, i32
  }
  func.func @transform_7(%arg0: i32, %arg1: i32) -> (i32, i32, i32) {
    %c0_i32 = arith.constant 0 : i32
    %c0_i32_0 = arith.constant 0 : i32
    %c0_i32_1 = arith.constant 0 : i32
    return %arg1, %c0_i32, %c0_i32_0 : i32, i32, i32
  }
  func.func @transform_8(%arg0: i32, %arg1: i32) -> (i32, i32, i32) {
    %c0_i32 = arith.constant 0 : i32
    %c0_i32_0 = arith.constant 0 : i32
    %c0_i32_1 = arith.constant 0 : i32
    return %arg1, %c0_i32, %c0_i32_0 : i32, i32, i32
  }
  func.func @transform_9(%arg0: i32, %arg1: i32) -> (i32, i32) {
    %c0_i32 = arith.constant 0 : i32
    %c0_i32_0 = arith.constant 0 : i32
    %c0_i32_1 = arith.constant 0 : i32
    return %c0_i32, %c0_i32_0 : i32, i32
  }
  func.func @transform_10(%arg0: i32, %arg1: i32) -> (i32, i32) {
    %c0_i32 = arith.constant 0 : i32
    %c0_i32_0 = arith.constant 0 : i32
    %c0_i32_1 = arith.constant 0 : i32
    return %c0_i32, %c0_i32_0 : i32, i32
  }
  func.func @transform_11(%arg0: i32, %arg1: i32) -> (i32, i32) {
    %c0_i32 = arith.constant 0 : i32
    %c0_i32_0 = arith.constant 0 : i32
    return %arg0, %c0_i32 : i32, i32
  }
}

</mosaic_0001>

<llo_original>
// kernel: tpu_custom_call.1
$region0: #{tpu_custom_call.1}
  #allocation0 [shape = 'u32[]', space=smem, size = 0x4, offset = 0x4, fixed_abs, tag = 'smem constant byte address 0x4 - core index']
  #allocation1 [shape = 'u32[72,128]{1,0:T(1,128)}', space=vmem, size = 0x9000, scoped, tag = 'internal scratch']
  #allocation2 [shape = 'f32[16,32]{1,0:T(8,128)}', space=vmem, size = 0x2000, scoped, tag = 'scratch operand']
  #allocation3 [shape = 'bf16[16,32]{1,0:T(8,128)(2,1)}', space=vmem, size = 0x1000, scoped, tag = 'scratch operand']
  #allocation4 [shape = 'f32[1,1]{1,0:T(1,128)S(1)}', space=vmem, size = 0x200, scoped, tag = 'scoped memory for tpu_custom_call.1']
  %s0 = inlined_call_operand.vmem [shape: f32[2,8,6], index: 0, kind: input, shape index: {}]
  %s1 = inlined_call_operand.hbm [shape: f32[6,32], index: 1, kind: input, shape index: {}]
  %s2 = inlined_call_operand.vmem [shape: f32[1,32], index: 2, kind: input, shape index: {}]
  %s3 = inlined_call_operand.hbm [shape: f32[1,8,32], index: 3, kind: input, shape index: {}]
  %s4 = inlined_call_operand.vmem [shape: bf16[2,3,32,32], index: 4, kind: input, shape index: {}]
  %s5 = inlined_call_operand.vmem [shape: bf16[2,32,32], index: 5, kind: input, shape index: {}]
  %s6 = inlined_call_operand.hbm [shape: bf16[2,32,64], index: 6, kind: input, shape index: {}]
  %s7 = inlined_call_operand.vmem [shape: bf16[2,64,32], index: 7, kind: input, shape index: {}]
  %s8 = inlined_call_operand.vmem [shape: f32[2,10,64], index: 8, kind: input, shape index: {}]
  %s9 = inlined_call_operand.vmem [shape: f32[1,32], index: 9, kind: input, shape index: {}]
  %s10 = inlined_call_operand.<no memory space> [shape: f32[1,1], index: 10, kind: input, shape index: {}]
  %s11 = inlined_call_operand.vmem [shape: f32[2,1], index: 11, kind: output, shape index: {}]
  %s12 = sld [smem:[#allocation0]]
  $region97: #{tpu_custom_call.1} parent=0
    _
  %s14 = ssub.s32 1, %s12
  %s15 = scalar_select 0, %s14, %s12
  %v16 = vstv %s10
  %17 = vst [vmem:[#allocation4] sm:$0x1] %v16
  $region1: #{tpu_custom_call.1} parent=0
    #allocation5 [shape = 'u8[4096]{0}', space=vmem, size = 0x1000, scoped, tag = 'input window, operand 1, single buffered']
    #allocation6 [shape = 's32[2]{0}', space=sflag, size = 0x8, scoped, tag = 'scoped memory for tpu_custom_call.1']
    #allocation7 [shape = 'u8[4096]{0}', space=vmem, size = 0x1000, scoped, tag = 'input window, operand 3, single buffered']
    #allocation8 [shape = 's32[1]{0}', space=sflag, size = 0x4, scoped, tag = 'scoped memory for tpu_custom_call.1']
    #allocation9 [shape = 'u8[16384]{0}', space=vmem, size = 0x4000, scoped, tag = 'input window, operand 6']
    %18 = vsyncpa [#allocation6], 0
    %19 = vsyncpa [#allocation8], 0
    loop: start=0, step=1, limit=4
    $region2: #{tpu_custom_call.1} parent=1 // loop_pre_header
      _
    $region3: #{tpu_custom_call.1} parent=1 // loop_header
      %s21 = sphi 0, %s25
      %p22 = scmp.ge.s32.totalorder %s21, 4
      %s28 = sphi 0, %s40
      %s29 = sphi 0, %s36
      %s30 = sphi 0, %s28
      %s31 = sphi 0, %s29
      %s32 = sphi 0, %s30
      %s33 = sphi 0, %s31
      %s43 = sphi 0, %s45
      %s46 = sphi 0, %s43
      %s47 = sphi 0, %s46
      %s63 = sphi 0, %s47
      %s67 = sphi 0, %s67
      %s69 = sphi 0, %s67
      %s70 = sphi 0, %s69
      %s84 = sphi 0, %s70
      %s88 = sphi 0, %s88
      %s90 = sphi 0, %s88
      %s91 = sphi 0, %s90
      %s105 = sphi 0, %s91
      %s109 = sphi 0, %s109
      %s111 = sphi 0, %s109
      %s112 = sphi 0, %s111
      %s126 = sphi 0, %s112
      %s132 = sphi 0, %s134
      %s135 = sphi 0, %s132
      %s136 = sphi 0, %s135
      %s152 = sphi 0, %s136
      %s158 = sphi 0, %s160
      %s161 = sphi 0, %s158
      %s162 = sphi 0, %s161
      %s178 = sphi 0, %s162
      %s184 = sphi 0, %s186
      %s187 = sphi 0, %s184
      %s188 = sphi 0, %s187
      %s204 = sphi 0, %s188
      %s210 = sphi 0, %s212
      %s213 = sphi 0, %s210
      %s214 = sphi 0, %s213
      %s230 = sphi 0, %s214
      %s236 = sphi 0, %s238
      %s239 = sphi 0, %s236
      %s240 = sphi 0, %s239
      %s256 = sphi 0, %s240
      %s260 = sphi 0, %s260
      %s262 = sphi 0, %s260
      %s263 = sphi 0, %s262
      %s277 = sphi 0, %s263
      %s281 = sphi 0, %s281
      %s283 = sphi 0, %s281
      %s284 = sphi 0, %s283
      %s298 = sphi 0, %s284
      %s304 = sphi 0, %s306
      %s307 = sphi 0, %s304
      %s308 = sphi 0, %s307
      %s324 = sphi 0, %s308
    $region4: #{tpu_custom_call.1} parent=1 // loop_header_branch
      %24 = sbr.rel (%p22) target = $region8
    $region5: #{tpu_custom_call.1} parent=1 // loop_body
      %s26 = ssub.s32 %s21, 1
      %s27 = ssub.s32 %s21, 2
      %s34 = sadd.s32 1, %s29
      %p35 = scmp.ge.s32.totalorder %s34, 2
      %s36 = scalar_select %p35, 0, %s34
      %s37 = sadd.s32 1, %s28
      %s38 = scalar_select %p35, %s37, %s28
      %p39 = scmp.ge.s32.totalorder %s38, 1
      %s40 = scalar_select %p39, 0, %s38
      %s41 = ssub.s32 %s28, %s40
      %p42 = scmp.eq.s32.totalorder %s41, 0
      %s44 = sadd.s32 %s43, 1
      %s45 = scalar_select %p42, %s43, %s44
      %p48 = pneg %p42
      %p49 = scmp.eq.s32.totalorder %s21, 1
      %p50 = por %p48, %p49
      %p51 = scmp.ne.s32.totalorder %s43, %s46
      %p52 = scmp.eq.s32.totalorder %s21, 0
      %p53 = por %p51, %p52
      %p54 = scmp.ne.s32.totalorder %s43, %s46
      %p55 = scmp.eq.s32.totalorder %s26, 1
      %p56 = por %p54, %p55
      %p57 = scmp.ne.s32.totalorder %s46, %s47
      %p58 = scmp.eq.s32.totalorder %s26, 0
      %p59 = por %p57, %p58
      %p60 = scmp.ne.s32.totalorder %s46, %s47
      %p61 = scmp.eq.s32.totalorder %s27, 1
      %p62 = por %p60, %p61
      %p64 = scmp.ne.s32.totalorder %s47, %s63
      %p65 = scmp.eq.s32.totalorder %s27, 0
      %p66 = por %p64, %p65
      %s68 = sadd.s32 %s67, 1
      %p71 = scmp.eq.s32.totalorder %s21, 1
      %p72 = scmp.ne.s32.totalorder %s67, %s69
      %p73 = scmp.eq.s32.totalorder %s21, 0
      %p74 = por %p72, %p73
      %p75 = scmp.ne.s32.totalorder %s67, %s69
      %p76 = scmp.eq.s32.totalorder %s26, 1
      %p77 = por %p75, %p76
      %p78 = scmp.ne.s32.totalorder %s69, %s70
      %p79 = scmp.eq.s32.totalorder %s26, 0
      %p80 = por %p78, %p79
      %p81 = scmp.ne.s32.totalorder %s69, %s70
      %p82 = scmp.eq.s32.totalorder %s27, 1
      %p83 = por %p81, %p82
      %p85 = scmp.ne.s32.totalorder %s70, %s84
      %p86 = scmp.eq.s32.totalorder %s27, 0
      %p87 = por %p85, %p86
      %s89 = sadd.s32 %s88, 1
      %p92 = scmp.eq.s32.totalorder %s21, 1
      %p93 = scmp.ne.s32.totalorder %s88, %s90
      %p94 = scmp.eq.s32.totalorder %s21, 0
      %p95 = por %p93, %p94
      %p96 = scmp.ne.s32.totalorder %s88, %s90
      %p97 = scmp.eq.s32.totalorder %s26, 1
      %p98 = por %p96, %p97
      %p99 = scmp.ne.s32.totalorder %s90, %s91
      %p100 = scmp.eq.s32.totalorder %s26, 0
      %p101 = por %p99, %p100
      %p102 = scmp.ne.s32.totalorder %s90, %s91
      %p103 = scmp.eq.s32.totalorder %s27, 1
      %p104 = por %p102, %p103
      %p106 = scmp.ne.s32.totalorder %s91, %s105
      %p107 = scmp.eq.s32.totalorder %s27, 0
      %p108 = por %p106, %p107
      %s110 = sadd.s32 %s109, 1
      %p113 = scmp.eq.s32.totalorder %s21, 1
      %p114 = scmp.ne.s32.totalorder %s109, %s111
      %p115 = scmp.eq.s32.totalorder %s21, 0
      %p116 = por %p114, %p115
      %p117 = scmp.ne.s32.totalorder %s109, %s111
      %p118 = scmp.eq.s32.totalorder %s26, 1
      %p119 = por %p117, %p118
      %p120 = scmp.ne.s32.totalorder %s111, %s112
      %p121 = scmp.eq.s32.totalorder %s26, 0
      %p122 = por %p120, %p121
      %p123 = scmp.ne.s32.totalorder %s111, %s112
      %p124 = scmp.eq.s32.totalorder %s27, 1
      %p125 = por %p123, %p124
      %p127 = scmp.ne.s32.totalorder %s112, %s126
      %p128 = scmp.eq.s32.totalorder %s27, 0
      %p129 = por %p127, %p128
      %s130 = ssub.s32 %s29, %s36
      %p131 = scmp.eq.s32.totalorder %s130, 0
      %s133 = sadd.s32 %s132, 1
      %s134 = scalar_select %p131, %s132, %s133
      %p137 = pneg %p131
      %p138 = scmp.eq.s32.totalorder %s21, 1
      %p139 = por %p137, %p138
      %p140 = scmp.ne.s32.totalorder %s132, %s135
      %p141 = scmp.eq.s32.totalorder %s21, 0
      %p142 = por %p140, %p141
      %p143 = scmp.ne.s32.totalorder %s132, %s135
      %p144 = scmp.eq.s32.totalorder %s26, 1
      %p145 = por %p143, %p144
      %p146 = scmp.ne.s32.totalorder %s135, %s136
      %p147 = scmp.eq.s32.totalorder %s26, 0
      %p148 = por %p146, %p147
      %p149 = scmp.ne.s32.totalorder %s135, %s136
      %p150 = scmp.eq.s32.totalorder %s27, 1
      %p151 = por %p149, %p150
      %p153 = scmp.ne.s32.totalorder %s136, %s152
      %p154 = scmp.eq.s32.totalorder %s27, 0
      %p155 = por %p153, %p154
      %s156 = ssub.s32 %s29, %s36
      %p157 = scmp.eq.s32.totalorder %s156, 0
      %s159 = sadd.s32 %s158, 1
      %s160 = scalar_select %p157, %s158, %s159
      %p163 = pneg %p157
      %p164 = scmp.eq.s32.totalorder %s21, 1
      %p165 = por %p163, %p164
      %p166 = scmp.ne.s32.totalorder %s158, %s161
      %p167 = scmp.eq.s32.totalorder %s21, 0
      %p168 = por %p166, %p167
      %p169 = scmp.ne.s32.totalorder %s158, %s161
      %p170 = scmp.eq.s32.totalorder %s26, 1
      %p171 = por %p169, %p170
      %p172 = scmp.ne.s32.totalorder %s161, %s162
      %p173 = scmp.eq.s32.totalorder %s26, 0
      %p174 = por %p172, %p173
      %p175 = scmp.ne.s32.totalorder %s161, %s162
      %p176 = scmp.eq.s32.totalorder %s27, 1
      %p177 = por %p175, %p176
      %p179 = scmp.ne.s32.totalorder %s162, %s178
      %p180 = scmp.eq.s32.totalorder %s27, 0
      %p181 = por %p179, %p180
      %s182 = ssub.s32 %s29, %s36
      %p183 = scmp.eq.s32.totalorder %s182, 0
      %s185 = sadd.s32 %s184, 1
      %s186 = scalar_select %p183, %s184, %s185
      %p189 = pneg %p183
      %p190 = scmp.eq.s32.totalorder %s21, 1
      %p191 = por %p189, %p190
      %p192 = scmp.ne.s32.totalorder %s184, %s187
      %p193 = scmp.eq.s32.totalorder %s21, 0
      %p194 = por %p192, %p193
      %p195 = scmp.ne.s32.totalorder %s184, %s187
      %p196 = scmp.eq.s32.totalorder %s26, 1
      %p197 = por %p195, %p196
      %p198 = scmp.ne.s32.totalorder %s187, %s188
      %p199 = scmp.eq.s32.totalorder %s26, 0
      %p200 = por %p198, %p199
      %p201 = scmp.ne.s32.totalorder %s187, %s188
      %p202 = scmp.eq.s32.totalorder %s27, 1
      %p203 = por %p201, %p202
      %p205 = scmp.ne.s32.totalorder %s188, %s204
      %p206 = scmp.eq.s32.totalorder %s27, 0
      %p207 = por %p205, %p206
      %s208 = ssub.s32 %s29, %s36
      %p209 = scmp.eq.s32.totalorder %s208, 0
      %s211 = sadd.s32 %s210, 1
      %s212 = scalar_select %p209, %s210, %s211
      %p215 = pneg %p209
      %p216 = scmp.eq.s32.totalorder %s21, 1
      %p217 = por %p215, %p216
      %p218 = scmp.ne.s32.totalorder %s210, %s213
      %p219 = scmp.eq.s32.totalorder %s21, 0
      %p220 = por %p218, %p219
      %p221 = scmp.ne.s32.totalorder %s210, %s213
      %p222 = scmp.eq.s32.totalorder %s26, 1
      %p223 = por %p221, %p222
      %p224 = scmp.ne.s32.totalorder %s213, %s214
      %p225 = scmp.eq.s32.totalorder %s26, 0
      %p226 = por %p224, %p225
      %p227 = scmp.ne.s32.totalorder %s213, %s214
      %p228 = scmp.eq.s32.totalorder %s27, 1
      %p229 = por %p227, %p228
      %p231 = scmp.ne.s32.totalorder %s214, %s230
      %p232 = scmp.eq.s32.totalorder %s27, 0
      %p233 = por %p231, %p232
      %s234 = ssub.s32 %s29, %s36
      %p235 = scmp.eq.s32.totalorder %s234, 0
      %s237 = sadd.s32 %s236, 1
      %s238 = scalar_select %p235, %s236, %s237
      %p241 = pneg %p235
      %p242 = scmp.eq.s32.totalorder %s21, 1
      %p243 = por %p241, %p242
      %p244 = scmp.ne.s32.totalorder %s236, %s239
      %p245 = scmp.eq.s32.totalorder %s21, 0
      %p246 = por %p244, %p245
      %p247 = scmp.ne.s32.totalorder %s236, %s239
      %p248 = scmp.eq.s32.totalorder %s26, 1
      %p249 = por %p247, %p248
      %p250 = scmp.ne.s32.totalorder %s239, %s240
      %p251 = scmp.eq.s32.totalorder %s26, 0
      %p252 = por %p250, %p251
      %p253 = scmp.ne.s32.totalorder %s239, %s240
      %p254 = scmp.eq.s32.totalorder %s27, 1
      %p255 = por %p253, %p254
      %p257 = scmp.ne.s32.totalorder %s240, %s256
      %p258 = scmp.eq.s32.totalorder %s27, 0
      %p259 = por %p257, %p258
      %s261 = sadd.s32 %s260, 1
      %p264 = scmp.eq.s32.totalorder %s21, 1
      %p265 = scmp.ne.s32.totalorder %s260, %s262
      %p266 = scmp.eq.s32.totalorder %s21, 0
      %p267 = por %p265, %p266
      %p268 = scmp.ne.s32.totalorder %s260, %s262
      %p269 = scmp.eq.s32.totalorder %s26, 1
      %p270 = por %p268, %p269
      %p271 = scmp.ne.s32.totalorder %s262, %s263
      %p272 = scmp.eq.s32.totalorder %s26, 0
      %p273 = por %p271, %p272
      %p274 = scmp.ne.s32.totalorder %s262, %s263
      %p275 = scmp.eq.s32.totalorder %s27, 1
      %p276 = por %p274, %p275
      %p278 = scmp.ne.s32.totalorder %s263, %s277
      %p279 = scmp.eq.s32.totalorder %s27, 0
      %p280 = por %p278, %p279
      %s282 = sadd.s32 %s281, 1
      %p285 = scmp.eq.s32.totalorder %s21, 1
      %p286 = scmp.ne.s32.totalorder %s281, %s283
      %p287 = scmp.eq.s32.totalorder %s21, 0
      %p288 = por %p286, %p287
      %p289 = scmp.ne.s32.totalorder %s281, %s283
      %p290 = scmp.eq.s32.totalorder %s26, 1
      %p291 = por %p289, %p290
      %p292 = scmp.ne.s32.totalorder %s283, %s284
      %p293 = scmp.eq.s32.totalorder %s26, 0
      %p294 = por %p292, %p293
      %p295 = scmp.ne.s32.totalorder %s283, %s284
      %p296 = scmp.eq.s32.totalorder %s27, 1
      %p297 = por %p295, %p296
      %p299 = scmp.ne.s32.totalorder %s284, %s298
      %p300 = scmp.eq.s32.totalorder %s27, 0
      %p301 = por %p299, %p300
      %s302 = ssub.s32 %s28, %s40
      %p303 = scmp.eq.s32.totalorder %s302, 0
      %s305 = sadd.s32 %s304, 1
      %s306 = scalar_select %p303, %s304, %s305
      %p309 = pneg %p303
      %p310 = scmp.eq.s32.totalorder %s21, 1
      %p311 = por %p309, %p310
      %p312 = scmp.ne.s32.totalorder %s304, %s307
      %p313 = scmp.eq.s32.totalorder %s21, 0
      %p314 = por %p312, %p313
      %p315 = scmp.ne.s32.totalorder %s304, %s307
      %p316 = scmp.eq.s32.totalorder %s26, 1
      %p317 = por %p315, %p316
      %p318 = scmp.ne.s32.totalorder %s307, %s308
      %p319 = scmp.eq.s32.totalorder %s26, 0
      %p320 = por %p318, %p319
      %p321 = scmp.ne.s32.totalorder %s307, %s308
      %p322 = scmp.eq.s32.totalorder %s27, 1
      %p323 = por %p321, %p322
      %p325 = scmp.ne.s32.totalorder %s308, %s324
      %p326 = scmp.eq.s32.totalorder %s27, 0
      %p327 = por %p325, %p326
      %p328 = scmp.le.s32.totalorder 1, %s21
      %p329 = scmp.lt.s32.totalorder %s21, 3
      %p330 = pnand %p328, %p329
      %p331 = pneg %p330
      // Predicated region
      $region9: #{tpu_custom_call.1} parent=5 // pred_check
        _
      $region10: #{tpu_custom_call.1} parent=5 // pred_check_branch
        %333 = sbr.rel (%p330) target = $region12
      $region11: #{tpu_custom_call.1} parent=5 // pred_region
        %s334 = ssub.s32 %s21, 1
        // Predicated region
        $region13: #{tpu_custom_call.1} parent=11 // pred_check
          %p335 = pneg %p59
        $region14: #{tpu_custom_call.1} parent=11 // pred_check_branch
          %337 = sbr.rel (%p335) target = $region16
        $region15: #{tpu_custom_call.1} parent=11 // pred_region
          %s338 = smul.u32 2, %s30
          %p339 = scmp.lt.s32.totalorder %s338, 1
          %s340 = scalar_select %p339, %s338, 1
          %s341 = smul.addr %s340, 8
          %s342 = scalar_lea.vmem %s0, %s341
          %s343 = smul.u32 2, %s30
        $region16: #{tpu_custom_call.1} parent=11 // pred_fallthru
          _
        // Predicated region
        $region17: #{tpu_custom_call.1} parent=11 // pred_check
          %p344 = pneg %p80
        $region18: #{tpu_custom_call.1} parent=11 // pred_check_branch
          %346 = sbr.rel (%p344) target = $region20
        $region19: #{tpu_custom_call.1} parent=11 // pred_region
          %348 = vsyncadd [#allocation6], 0
          %s350 = sshll.u32 %s1, 4
          %s351 = int_to_ptr.hbm [resolvable:$true] %s350
          %s352 = sshll.u32 [#allocation5], 4
          %s353 = int_to_ptr.vmem [resolvable:$true] %s352
          %355 = dma.hbm_to_vmem [thread:$0]  %s351, 128, %s353, [#allocation6]
        $region20: #{tpu_custom_call.1} parent=11 // pred_fallthru
          _
        // Predicated region
        $region21: #{tpu_custom_call.1} parent=11 // pred_check
          %p356 = pneg %p101
        $region22: #{tpu_custom_call.1} parent=11 // pred_check_branch
          %358 = sbr.rel (%p356) target = $region24
        $region23: #{tpu_custom_call.1} parent=11 // pred_region
          _
        $region24: #{tpu_custom_call.1} parent=11 // pred_fallthru
          _
        // Predicated region
        $region25: #{tpu_custom_call.1} parent=11 // pred_check
          %p359 = pneg %p122
        $region26: #{tpu_custom_call.1} parent=11 // pred_check_branch
          %361 = sbr.rel (%p359) target = $region28
        $region27: #{tpu_custom_call.1} parent=11 // pred_region
          %363 = vsyncadd [#allocation8], 0
          %s365 = sshll.u32 %s3, 4
          %s366 = int_to_ptr.hbm [resolvable:$true] %s365
          %s367 = sshll.u32 [#allocation7], 4
          %s368 = int_to_ptr.vmem [resolvable:$true] %s367
          %370 = dma.hbm_to_vmem [thread:$0]  %s366, 128, %s368, [#allocation8]
        $region28: #{tpu_custom_call.1} parent=11 // pred_fallthru
          _
        // Predicated region
        $region29: #{tpu_custom_call.1} parent=11 // pred_check
          %p371 = pneg %p273
        $region30: #{tpu_custom_call.1} parent=11 // pred_check_branch
          %373 = sbr.rel (%p371) target = $region32
        $region31: #{tpu_custom_call.1} parent=11 // pred_region
          _
        $region32: #{tpu_custom_call.1} parent=11 // pred_fallthru
          _
        // Predicated region
        $region33: #{tpu_custom_call.1} parent=11 // pred_check
          %p374 = pneg %p294
        $region34: #{tpu_custom_call.1} parent=11 // pred_check_branch
          %376 = sbr.rel (%p374) target = $region36
        $region35: #{tpu_custom_call.1} parent=11 // pred_region
          _
        $region36: #{tpu_custom_call.1} parent=11 // pred_fallthru
          _
      $region12: #{tpu_custom_call.1} parent=5 // pred_fallthru
        _
      %p377 = scmp.lt.s32.totalorder %s21, 2
      // Predicated region
      $region37: #{tpu_custom_call.1} parent=5 // pred_check
        %p378 = pneg %p377
      $region38: #{tpu_custom_call.1} parent=5 // pred_check_branch
        %380 = sbr.rel (%p378) target = $region40
      $region39: #{tpu_custom_call.1} parent=5 // pred_region
        // Predicated region
        $region41: #{tpu_custom_call.1} parent=39 // pred_check
          %p381 = pneg %p142
        $region42: #{tpu_custom_call.1} parent=39 // pred_check_branch
          %383 = sbr.rel (%p381) target = $region44
        $region43: #{tpu_custom_call.1} parent=39 // pred_region
          %p384 = scmp.lt.s32.totalorder %s29, 1
          %s385 = scalar_select %p384, %s29, 1
          %s386 = smul.addr %s385, 12
          %s387 = smul.addr %s386, 4
          %s388 = scalar_lea.vmem %s4, %s387
        $region44: #{tpu_custom_call.1} parent=39 // pred_fallthru
          _
        // Predicated region
        $region45: #{tpu_custom_call.1} parent=39 // pred_check
          %p389 = pneg %p168
        $region46: #{tpu_custom_call.1} parent=39 // pred_check_branch
          %391 = sbr.rel (%p389) target = $region48
        $region47: #{tpu_custom_call.1} parent=39 // pred_region
          %p392 = scmp.lt.s32.totalorder %s29, 1
          %s393 = scalar_select %p392, %s29, 1
          %s394 = smul.addr %s393, 4
          %s395 = smul.addr %s394, 4
          %s396 = scalar_lea.vmem %s5, %s395
        $region48: #{tpu_custom_call.1} parent=39 // pred_fallthru
          _
        // Predicated region
        $region49: #{tpu_custom_call.1} parent=39 // pred_check
          %p397 = pneg %p194
        $region50: #{tpu_custom_call.1} parent=39 // pred_check_branch
          %399 = sbr.rel (%p397) target = $region52
        $region51: #{tpu_custom_call.1} parent=39 // pred_region
          %s400 = sand.u32 %s21, 1
          %s401 = scalar_lea.sflag [#allocation6], %s400
          %s402 = sand.u32 %s184, 1
          %s403 = smul.addr %s402, 16
          %s404 = scalar_lea.vmem [#allocation9], %s403
          %406 = vsyncadd %s401, 0
          %s407 = smul.addr %s29, 4
          %s408 = smul.addr %s407, 4
          %s409 = scalar_lea.hbm %s6, %s408
          %s410 = sshll.u32 %s409, 4
          %s411 = int_to_ptr.hbm [resolvable:$true] %s410
          %s412 = sshll.u32 %s404, 4
          %s413 = int_to_ptr.vmem [resolvable:$true] %s412
          %418 = dma.hbm_to_vmem [thread:$0]  %s411, 256, %s413, %s401, 64, 64, 4
        $region52: #{tpu_custom_call.1} parent=39 // pred_fallthru
          _
        // Predicated region
        $region53: #{tpu_custom_call.1} parent=39 // pred_check
          %p419 = pneg %p220
        $region54: #{tpu_custom_call.1} parent=39 // pred_check_branch
          %421 = sbr.rel (%p419) target = $region56
        $region55: #{tpu_custom_call.1} parent=39 // pred_region
          %p422 = scmp.lt.s32.totalorder %s29, 1
          %s423 = scalar_select %p422, %s29, 1
          %s424 = smul.addr %s423, 8
          %s425 = smul.addr %s424, 4
          %s426 = scalar_lea.vmem %s7, %s425
        $region56: #{tpu_custom_call.1} parent=39 // pred_fallthru
          _
        // Predicated region
        $region57: #{tpu_custom_call.1} parent=39 // pred_check
          %p427 = pneg %p246
        $region58: #{tpu_custom_call.1} parent=39 // pred_check_branch
          %429 = sbr.rel (%p427) target = $region60
        $region59: #{tpu_custom_call.1} parent=39 // pred_region
          %p430 = scmp.lt.s32.totalorder %s29, 1
          %s431 = scalar_select %p430, %s29, 1
          %s432 = smul.addr %s431, 2
          %s433 = smul.addr %s432, 8
          %s434 = scalar_lea.vmem %s8, %s433
        $region60: #{tpu_custom_call.1} parent=39 // pred_fallthru
          _
      $region40: #{tpu_custom_call.1} parent=5 // pred_fallthru
        _
      %p435 = scmp.le.s32.totalorder 1, %s21
      %p436 = scmp.lt.s32.totalorder %s21, 3
      %p437 = pnand %p435, %p436
      %p438 = pneg %p437
      // Predicated region
      $region61: #{tpu_custom_call.1} parent=5 // pred_check
        _
      $region62: #{tpu_custom_call.1} parent=5 // pred_check_branch
        %440 = sbr.rel (%p437) target = $region64
      $region63: #{tpu_custom_call.1} parent=5 // pred_region
        %s441 = ssub.s32 %s21, 1
        // Predicated region
        $region65: #{tpu_custom_call.1} parent=63 // pred_check
          %p442 = pneg %p80
        $region66: #{tpu_custom_call.1} parent=63 // pred_check_branch
          %444 = sbr.rel (%p442) target = $region68
        $region67: #{tpu_custom_call.1} parent=63 // pred_region
          %446 = dma.done [#allocation6], 128
        $region68: #{tpu_custom_call.1} parent=63 // pred_fallthru
          _
        // Predicated region
        $region69: #{tpu_custom_call.1} parent=63 // pred_check
          %p447 = pneg %p122
        $region70: #{tpu_custom_call.1} parent=63 // pred_check_branch
          %449 = sbr.rel (%p447) target = $region72
        $region71: #{tpu_custom_call.1} parent=63 // pred_region
          %451 = dma.done [#allocation8], 128
        $region72: #{tpu_custom_call.1} parent=63 // pred_fallthru
          _
        %s452 = sand.u32 %s26, 1
        %s453 = scalar_lea.sflag [#allocation6], %s452
        %s454 = sand.u32 %s187, 1
        %s455 = smul.addr %s454, 16
        %s456 = scalar_lea.vmem [#allocation9], %s455
        // Predicated region
        $region73: #{tpu_custom_call.1} parent=63 // pred_check
          %p457 = pneg %p200
        $region74: #{tpu_custom_call.1} parent=63 // pred_check_branch
          %459 = sbr.rel (%p457) target = $region76
        $region75: #{tpu_custom_call.1} parent=63 // pred_region
          %461 = dma.done %s453, 256
        $region76: #{tpu_custom_call.1} parent=63 // pred_fallthru
          _
        %s462 = smul.u32 2, %s30
        %p463 = scmp.lt.s32.totalorder %s462, 1
        %s464 = scalar_select %p463, %s462, 1
        %s465 = smul.addr %s464, 8
        %s466 = scalar_lea.vmem %s0, %s465
        %p467 = pneg %p59
        %p468 = pneg %p56
        %p469 = pneg %p80
        %p470 = pneg %p77
        %p471 = pneg %p101
        %p472 = pneg %p98
        %p473 = pneg %p122
        %p474 = pneg %p119
        %p475 = scmp.lt.s32.totalorder %s31, 1
        %s476 = scalar_select %p475, %s31, 1
        %s477 = smul.addr %s476, 12
        %s478 = smul.addr %s477, 4
        %s479 = scalar_lea.vmem %s4, %s478
        %p480 = pneg %p148
        %p481 = pneg %p145
        %p482 = scmp.lt.s32.totalorder %s31, 1
        %s483 = scalar_select %p482, %s31, 1
        %s484 = smul.addr %s483, 4
        %s485 = smul.addr %s484, 4
        %s486 = scalar_lea.vmem %s5, %s485
        %p487 = pneg %p174
        %p488 = pneg %p171
        %s489 = sand.u32 %s26, 1
        %s490 = scalar_lea.sflag [#allocation6], %s489
        %s491 = sand.u32 %s187, 1
        %s492 = smul.addr %s491, 16
        %s493 = scalar_lea.vmem [#allocation9], %s492
        %p494 = pneg %p200
        %p495 = pneg %p197
        %p496 = scmp.lt.s32.totalorder %s31, 1
        %s497 = scalar_select %p496, %s31, 1
        %s498 = smul.addr %s497, 8
        %s499 = smul.addr %s498, 4
        %s500 = scalar_lea.vmem %s7, %s499
        %p501 = pneg %p226
        %p502 = pneg %p223
        %p503 = scmp.lt.s32.totalorder %s31, 1
        %s504 = scalar_select %p503, %s31, 1
        %s505 = smul.addr %s504, 2
        %s506 = smul.addr %s505, 8
        %s507 = scalar_lea.vmem %s8, %s506
        %p508 = pneg %p252
        %p509 = pneg %p249
        %p510 = pneg %p273
        %p511 = pneg %p270
        %p512 = pneg %p294
        %p513 = pneg %p291
        %p514 = pneg %p320
        %p515 = pneg %p317
        %p516 = scmp.lt.s32.totalorder %s30, 0
        %s517 = scalar_select %p516, %s30, 0
        %s518 = smul.addr %s517, 2
        %s519 = scalar_lea.vmem %s11, %s518
        %s520 = smul.u32 2, %s30
        %p521 = scmp.lt.s32.totalorder %s520, 1
        %s522 = scalar_select %p521, %s520, 1
        %s523 = smul.addr %s522, 8
        %s524 = scalar_lea.vmem %s0, %s523
        %s525 = smul.u32 2, %s30
        %p526 = scmp.lt.s32.totalorder %s31, 1
        %s527 = scalar_select %p526, %s31, 1
        %s528 = smul.addr %s527, 12
        %s529 = smul.addr %s528, 4
        %s530 = scalar_lea.vmem %s4, %s529
        %p531 = scmp.lt.s32.totalorder %s31, 1
        %s532 = scalar_select %p531, %s31, 1
        %s533 = smul.addr %s532, 4
        %s534 = smul.addr %s533, 4
        %s535 = scalar_lea.vmem %s5, %s534
        %p536 = scmp.lt.s32.totalorder %s31, 1
        %s537 = scalar_select %p536, %s31, 1
        %s538 = smul.addr %s537, 8
        %s539 = smul.addr %s538, 4
        %s540 = scalar_lea.vmem %s7, %s539
        %p541 = scmp.lt.s32.totalorder %s31, 1
        %s542 = scalar_select %p541, %s31, 1
        %s543 = smul.addr %s542, 2
        %s544 = smul.addr %s543, 8
        %s545 = scalar_lea.vmem %s8, %s544
        %p546 = scmp.lt.s32.totalorder %s30, 0
        %s547 = scalar_select %p546, %s30, 0
        %s548 = smul.addr %s547, 2
        %s549 = scalar_lea.vmem %s11, %s548
        %p551 = scmp.eq.s32.totalorder %s31, 0
        // Predicated region
        $region77: #{tpu_custom_call.1} parent=63 // pred_check
          %p552 = pneg %p551
        $region78: #{tpu_custom_call.1} parent=63 // pred_check_branch
          %554 = sbr.rel (%p552) target = $region80
        $region79: #{tpu_custom_call.1} parent=63 // pred_region
          %v555 = vld [vmem:[%s524] sm:$0xff]
          %v556 = vld [vmem:[%s524 + $0x8] sm:$0xff]
          %v557 = vld [vmem:[#allocation5] sm:$0x3f]
          %v558 = vld [vmem:[%s2] sm:$0x1]
          %v560 = vperm.slane %v558, 0
          %vm562 = vcmask 48128
          %v564 = vsel %vm562, %v555, 0
          %v567 = vsel %vm562, %v556, 0
          %vm569 = vcmask 1045504
          %v571 = vsel %vm569, %v557, 0
          %573 = vmatpush.msra.mxu0 0.0
          %574 = vmatpush.msra.mxu0 0.0
          %575 = vmatpush.msra.mxu0 0.0
          %576 = vmatpush.msra.mxu0 0.0
          %577 = vmatpush.msra.mxu0 0.0
          %578 = vmatpush.msra.mxu0 0.0
          %579 = vmatpush.msra.mxu0 0.0
          %580 = vmatpush.msra.mxu0 0.0
          %581 = vmatpush.msra.mxu0 0.0
          %582 = vmatpush.msra.mxu0 0.0
          %583 = vmatpush.msra.mxu0 0.0
          %584 = vmatpush.msra.mxu0 0.0
          %585 = vmatpush.msra.mxu0 0.0
          %586 = vmatpush.msra.mxu0 0.0
          %587 = vmatpush.msra.mxu0 0.0
          %588 = vmatpush.msra.mxu0 %v571
          %589 = vmatmul.f32.gmra.mxu0 %v564
          %v590 = vpop.f32.mrf.mxu0
          %v591 = vadd.f32 %v560, %v590
          %592 = vmatmul.f32.gmra.mxu0 %v567
          %v593 = vpop.f32.mrf.mxu0
          %v594 = vadd.f32 %v560, %v593
          %595 = vdwg.mxu0
          %v596 = vld [vmem:[#allocation7] sm:$0xff]
          %v597 = vadd.f32 %v591, %v596
          %v598 = vadd.f32 %v594, %v596
          %vm599 = vcmask 261120
          %600 = vst.msk [vmem:[#allocation2] sm:$0xff] %vm599, %v597
          %601 = vst.msk [vmem:[#allocation2 + $0x8] sm:$0xff] %vm599, %v598
        $region80: #{tpu_custom_call.1} parent=63 // pred_fallthru
          _
        %v602 = vld [vmem:[#allocation2] sm:$0xff]
        %v603 = vld [vmem:[#allocation2 + $0x8] sm:$0xff]
        %v604 = vpack.c.bf16 %v603, %v602
        %v605 = vld [vmem:[%s530] sm:$0xf]
        %v606 = vld [vmem:[%s530 + $0x4] sm:$0xf]
        %v607 = vld [vmem:[%s530 + $0x8] sm:$0xf]
        %v608 = vld [vmem:[%s530 + $0xc] sm:$0xf]
        %v609 = vld [vmem:[%s545] sm:$0x1]
        %v610 = vperm.slane %v609, 0
        %v615 = vunpack.c.l.b16 %v605
        %v616 = vunpack.c.l.b16 %v606
        %v617 = vunpack.c.l.b16 %v607
        %v618 = vunpack.c.l.b16 %v608
        %v619 = vpack.c.b16 %v616, %v615
        %v620 = vpack.c.b16 %v618, %v617
        %vm623 = vcmask 261120
        %v625 = vsel %vm623, %v604, 0
        %627 = vmatpush.bf16.msra.mxu0 0
        %628 = vmatpush.bf16.msra.mxu0 0
        %629 = vmatpush.bf16.msra.mxu0 0
        %630 = vmatpush.bf16.msra.mxu0 0
        %631 = vmatpush.bf16.msra.mxu0 0
        %632 = vmatpush.bf16.msra.mxu0 0
        %633 = vmatpush.bf16.msra.mxu0 %v620
        %634 = vmatpush.bf16.msra.mxu0 %v619
        %635 = vmatmul.bf16.gmra.mxu0 %v625
        %v636 = vpop.f32.mrf.mxu0
        %v637 = vadd.f32 %v610, %v636
        %v638 = vpop.f32.mrf.mxu0
        %v639 = vadd.f32 %v610, %v638
        %640 = vdwg.mxu0
        %s641 = scalar_lea.vmem %s530, 16
        %v642 = vld [vmem:[%s641] sm:$0xf]
        %v643 = vld [vmem:[%s641 + $0x4] sm:$0xf]
        %v644 = vld [vmem:[%s641 + $0x8] sm:$0xf]
        %v645 = vld [vmem:[%s641 + $0xc] sm:$0xf]
        %v646 = vld [vmem:[%s545 + $0x1] sm:$0x1]
        %v647 = vperm.slane %v646, 0
        %v652 = vunpack.c.l.b16 %v642
        %v653 = vunpack.c.l.b16 %v643
        %v654 = vunpack.c.l.b16 %v644
        %v655 = vunpack.c.l.b16 %v645
        %v656 = vpack.c.b16 %v653, %v652
        %v657 = vpack.c.b16 %v655, %v654
        %660 = vmatpush.bf16.msra.mxu0 0
        %661 = vmatpush.bf16.msra.mxu0 0
        %662 = vmatpush.bf16.msra.mxu0 0
        %663 = vmatpush.bf16.msra.mxu0 0
        %664 = vmatpush.bf16.msra.mxu0 0
        %665 = vmatpush.bf16.msra.mxu0 0
        %666 = vmatpush.bf16.msra.mxu0 %v657
        %667 = vmatpush.bf16.msra.mxu0 %v656
        %668 = vmatmul.bf16.gmra.mxu0 %v625
        %v669 = vpop.f32.mrf.mxu0
        %v670 = vadd.f32 %v647, %v669
        %v671 = vpop.f32.mrf.mxu0
        %v672 = vadd.f32 %v647, %v671
        %673 = vdwg.mxu0
        %s674 = scalar_lea.vmem %s530, 32
        %v675 = vld [vmem:[%s674] sm:$0xf]
        %v676 = vld [vmem:[%s674 + $0x4] sm:$0xf]
        %v677 = vld [vmem:[%s674 + $0x8] sm:$0xf]
        %v678 = vld [vmem:[%s674 + $0xc] sm:$0xf]
        %v679 = vld [vmem:[%s545 + $0x2] sm:$0x1]
        %v680 = vperm.slane %v679, 0
        %v685 = vunpack.c.l.b16 %v675
        %v686 = vunpack.c.l.b16 %v676
        %v687 = vunpack.c.l.b16 %v677
        %v688 = vunpack.c.l.b16 %v678
        %v689 = vpack.c.b16 %v686, %v685
        %v690 = vpack.c.b16 %v688, %v687
        %693 = vmatpush.bf16.msra.mxu0 0
        %694 = vmatpush.bf16.msra.mxu0 0
        %695 = vmatpush.bf16.msra.mxu0 0
        %696 = vmatpush.bf16.msra.mxu0 0
        %697 = vmatpush.bf16.msra.mxu0 0
        %698 = vmatpush.bf16.msra.mxu0 0
        %699 = vmatpush.bf16.msra.mxu0 %v690
        %700 = vmatpush.bf16.msra.mxu0 %v689
        %701 = vmatmul.bf16.gmra.mxu0 %v625
        %v702 = vpop.f32.mrf.mxu0
        %v703 = vadd.f32 %v680, %v702
        %v704 = vpop.f32.mrf.mxu0
        %v705 = vadd.f32 %v680, %v704
        %706 = vdwg.mxu0
        %v707 = vmul.f32 %v637, 0.35355338
        %v708 = vmul.f32 %v639, 0.35355338
        %v709 = vpack.c.bf16 %v707, %v707
        %v710 = vpack.c.bf16 %v708, %v708
        %v711 = vpack.c.bf16 %v670, %v670
        %v712 = vpack.c.bf16 %v672, %v672
        %v713 = vpack.c.bf16 %v703, %v703
        %v714 = vpack.c.bf16 %v705, %v705
        %vm715 = vcmask 64512
        %v717 = vsel %vm715, %v709, 0
        %v720 = vsel %vm715, %v711, 0
        %722 = vmatpush.bf16.xpose.msra.mxu0 0
        %723 = vmatpush.bf16.xpose.msra.mxu0 0
        %724 = vmatpush.bf16.xpose.msra.mxu0 0
        %725 = vmatpush.bf16.xpose.msra.mxu0 0
        %726 = vmatpush.bf16.xpose.msra.mxu0 0
        %727 = vmatpush.bf16.xpose.msra.mxu0 0
        %728 = vmatpush.bf16.xpose.msra.mxu0 0
        %729 = vmatpush.bf16.xpose.msra.mxu0 %v720
        %730 = vmatmul.bf16.gmra.mxu0 %v717
        %v731 = vpop.f32.mrf.mxu0
        %v732 = vadd.f32 0.0, %v731
        %v733 = vpop.f32.mrf.mxu0
        %734 = vdwg.mxu0
        %v736 = vsel %vm715, %v710, 0
        %v739 = vsel %vm715, %v712, 0
        %741 = vmatpush.bf16.xpose.msra.mxu0 0
        %742 = vmatpush.bf16.xpose.msra.mxu0 0
        %743 = vmatpush.bf16.xpose.msra.mxu0 0
        %744 = vmatpush.bf16.xpose.msra.mxu0 0
        %745 = vmatpush.bf16.xpose.msra.mxu0 0
        %746 = vmatpush.bf16.xpose.msra.mxu0 0
        %747 = vmatpush.bf16.xpose.msra.mxu0 0
        %748 = vmatpush.bf16.xpose.msra.mxu0 %v739
        %749 = vmatmul.bf16.gmra.mxu0 %v736
        %v750 = vpop.f32.mrf.mxu0
        %v751 = vadd.f32 0.0, %v750
        %v752 = vpop.f32.mrf.mxu0
        %753 = vdwg.mxu0
        %v754 = vsel %vm715, %v732, -inf
        %755 = vmax.xlane.f32.xlu0 %v754
        %v756 = vpop.xlane.xlu0 %755
        %v757 = vsel %vm715, %v751, -inf
        %758 = vmax.xlane.f32.xlu0 %v757
        %v759 = vpop.xlane.xlu0 %758
        %v760 = vsub.f32 %v732, %v756
        %v761 = vsub.f32 %v751, %v759
        %v762 = vmul.f32 %v760, 1.442695
        %v763 = vpow.pop %v762
        %v764 = vmul.f32 %v761, 1.442695
        %v765 = vpow.pop %v764
        %v766 = vsel %vm715, %v763, 0.0
        %767 = vadd.xlane.f32.xlu0 %v766
        %v768 = vpop.xlane.xlu0 %767
        %v769 = vsel %vm715, %v765, 0.0
        %770 = vadd.xlane.f32.xlu0 %v769
        %v771 = vpop.xlane.xlu0 %770
        %v772 = vrcp.pop %v768
        %v773 = vmul.f32 %v768, %v772
        %v774 = vsub.f32 1.0, %v773
        %v775 = vmul.f32 %v772, %v774
        %v776 = vadd.f32 %v772, %v775
        %vm777 = vweird.f32 %v768
        %vm778 = vweird.f32 %v772
        %vm779 = vmor %vm777, %vm778
        %v780 = vsel %vm779, %v772, %v776
        %v781 = vand.u32 2147483647, %v768
        %vm782 = vcmp.eq.f32.partialorder %v781, 8.507059e+37
        %v783 = vand.u32 %v768, 2147483648
        %v784 = vor.u32 1.1754944e-38, %v783
        %v785 = vsel %vm782, %v784, %v780
        %v786 = vmul.f32 %v763, %v785
        %v787 = vrcp.pop %v771
        %v788 = vmul.f32 %v771, %v787
        %v789 = vsub.f32 1.0, %v788
        %v790 = vmul.f32 %v787, %v789
        %v791 = vadd.f32 %v787, %v790
        %vm792 = vweird.f32 %v771
        %vm793 = vweird.f32 %v787
        %vm794 = vmor %vm792, %vm793
        %v795 = vsel %vm794, %v787, %v791
        %v796 = vand.u32 2147483647, %v771
        %vm797 = vcmp.eq.f32.partialorder %v796, 8.507059e+37
        %v798 = vand.u32 %v771, 2147483648
        %v799 = vor.u32 1.1754944e-38, %v798
        %v800 = vsel %vm797, %v799, %v795
        %v801 = vmul.f32 %v765, %v800
        %v802 = vpack.c.bf16 %v786, %v786
        %v803 = vpack.c.bf16 %v801, %v801
        %v805 = vsel %vm715, %v802, 0
        %vm807 = vcmask 1043456
        %v809 = vsel %vm807, %v713, 0
        %811 = vmatpush.bf16.msra.mxu0 0
        %812 = vmatpush.bf16.msra.mxu0 0
        %813 = vmatpush.bf16.msra.mxu0 0
        %814 = vmatpush.bf16.msra.mxu0 0
        %815 = vmatpush.bf16.msra.mxu0 0
        %816 = vmatpush.bf16.msra.mxu0 0
        %817 = vmatpush.bf16.msra.mxu0 0
        %818 = vmatpush.bf16.msra.mxu0 %v809
        %819 = vmatmul.bf16.gmra.mxu0 %v805
        %v820 = vpop.f32.mrf.mxu0
        %v821 = vadd.f32 0.0, %v820
        %v822 = vpop.f32.mrf.mxu0
        %823 = vdwg.mxu0
        %v825 = vsel %vm715, %v803, 0
        %v828 = vsel %vm807, %v714, 0
        %830 = vmatpush.bf16.msra.mxu0 0
        %831 = vmatpush.bf16.msra.mxu0 0
        %832 = vmatpush.bf16.msra.mxu0 0
        %833 = vmatpush.bf16.msra.mxu0 0
        %834 = vmatpush.bf16.msra.mxu0 0
        %835 = vmatpush.bf16.msra.mxu0 0
        %836 = vmatpush.bf16.msra.mxu0 0
        %837 = vmatpush.bf16.msra.mxu0 %v828
        %838 = vmatmul.bf16.gmra.mxu0 %v825
        %v839 = vpop.f32.mrf.mxu0
        %v840 = vadd.f32 0.0, %v839
        %v841 = vpop.f32.mrf.mxu0
        %842 = vdwg.mxu0
        %v843 = vpack.c.bf16 %v821, %v821
        %v844 = vpack.c.bf16 %v840, %v840
        %vm845 = vcmask 60416
        %846 = vst.msk [vmem:[#allocation3] sm:$0xf] %vm845, %v843
        %847 = vst.msk [vmem:[#allocation3 + $0x4] sm:$0xf] %vm845, %v844
        %v849 = vunpack.c.l.b16 %v709
        %v850 = vpack.c.b16 %v849, %v849
        %851 = vrot.lane.b32.xlu0 %v850, 120
        %v852 = vpop.permute.xlu0 %851
        %v854 = vunpack.c.l.b16 %v711
        %v855 = vpack.c.b16 %v854, %v854
        %856 = vrot.lane.b32.xlu0 %v855, 120
        %v857 = vpop.permute.xlu0 %856
        %v859 = vsel %vm715, %v852, 0
        %v862 = vsel %vm715, %v857, 0
        %864 = vmatpush.bf16.xpose.msra.mxu0 0
        %865 = vmatpush.bf16.xpose.msra.mxu0 0
        %866 = vmatpush.bf16.xpose.msra.mxu0 0
        %867 = vmatpush.bf16.xpose.msra.mxu0 0
        %868 = vmatpush.bf16.xpose.msra.mxu0 0
        %869 = vmatpush.bf16.xpose.msra.mxu0 0
        %870 = vmatpush.bf16.xpose.msra.mxu0 0
        %871 = vmatpush.bf16.xpose.msra.mxu0 %v862
        %872 = vmatmul.bf16.gmra.mxu0 %v859
        %v873 = vpop.f32.mrf.mxu0
        %v874 = vadd.f32 0.0, %v873
        %v875 = vpop.f32.mrf.mxu0
        %876 = vdwg.mxu0
        %v878 = vunpack.c.l.b16 %v710
        %v879 = vpack.c.b16 %v878, %v878
        %880 = vrot.lane.b32.xlu0 %v879, 120
        %v881 = vpop.permute.xlu0 %880
        %v883 = vunpack.c.l.b16 %v712
        %v884 = vpack.c.b16 %v883, %v883
        %885 = vrot.lane.b32.xlu0 %v884, 120
        %v886 = vpop.permute.xlu0 %885
        %v888 = vsel %vm715, %v881, 0
        %v891 = vsel %vm715, %v886, 0
        %893 = vmatpush.bf16.xpose.msra.mxu0 0
        %894 = vmatpush.bf16.xpose.msra.mxu0 0
        %895 = vmatpush.bf16.xpose.msra.mxu0 0
        %896 = vmatpush.bf16.xpose.msra.mxu0 0
        %897 = vmatpush.bf16.xpose.msra.mxu0 0
        %898 = vmatpush.bf16.xpose.msra.mxu0 0
        %899 = vmatpush.bf16.xpose.msra.mxu0 0
        %900 = vmatpush.bf16.xpose.msra.mxu0 %v891
        %901 = vmatmul.bf16.gmra.mxu0 %v888
        %v902 = vpop.f32.mrf.mxu0
        %v903 = vadd.f32 0.0, %v902
        %v904 = vpop.f32.mrf.mxu0
        %905 = vdwg.mxu0
        %v906 = vsel %vm715, %v874, -inf
        %907 = vmax.xlane.f32.xlu0 %v906
        %v908 = vpop.xlane.xlu0 %907
        %v909 = vsel %vm715, %v903, -inf
        %910 = vmax.xlane.f32.xlu0 %v909
        %v911 = vpop.xlane.xlu0 %910
        %v912 = vsub.f32 %v874, %v908
        %v913 = vsub.f32 %v903, %v911
        %v914 = vmul.f32 %v912, 1.442695
        %v915 = vpow.pop %v914
        %v916 = vmul.f32 %v913, 1.442695
        %v917 = vpow.pop %v916
        %v918 = vsel %vm715, %v915, 0.0
        %919 = vadd.xlane.f32.xlu0 %v918
        %v920 = vpop.xlane.xlu0 %919
        %v921 = vsel %vm715, %v917, 0.0
        %922 = vadd.xlane.f32.xlu0 %v921
        %v923 = vpop.xlane.xlu0 %922
        %v924 = vrcp.pop %v920
        %v925 = vmul.f32 %v920, %v924
        %v926 = vsub.f32 1.0, %v925
        %v927 = vmul.f32 %v924, %v926
        %v928 = vadd.f32 %v924, %v927
        %vm929 = vweird.f32 %v920
        %vm930 = vweird.f32 %v924
        %vm931 = vmor %vm929, %vm930
        %v932 = vsel %vm931, %v924, %v928
        %v933 = vand.u32 2147483647, %v920
        %vm934 = vcmp.eq.f32.partialorder %v933, 8.507059e+37
        %v935 = vand.u32 %v920, 2147483648
        %v936 = vor.u32 1.1754944e-38, %v935
        %v937 = vsel %vm934, %v936, %v932
        %v938 = vmul.f32 %v915, %v937
        %v939 = vrcp.pop %v923
        %v940 = vmul.f32 %v923, %v939
        %v941 = vsub.f32 1.0, %v940
        %v942 = vmul.f32 %v939, %v941
        %v943 = vadd.f32 %v939, %v942
        %vm944 = vweird.f32 %v923
        %vm945 = vweird.f32 %v939
        %vm946 = vmor %vm944, %vm945
        %v947 = vsel %vm946, %v939, %v943
        %v948 = vand.u32 2147483647, %v923
        %vm949 = vcmp.eq.f32.partialorder %v948, 8.507059e+37
        %v950 = vand.u32 %v923, 2147483648
        %v951 = vor.u32 1.1754944e-38, %v950
        %v952 = vsel %vm949, %v951, %v947
        %v953 = vmul.f32 %v917, %v952
        %v954 = vpack.c.bf16 %v938, %v938
        %v955 = vpack.c.bf16 %v953, %v953
        %v957 = vunpack.c.l.b16 %v713
        %v958 = vpack.c.b16 %v957, %v957
        %959 = vrot.lane.b32.xlu0 %v958, 120
        %v960 = vpop.permute.xlu0 %959
        %v962 = vsel %vm715, %v954, 0
        %v965 = vsel %vm807, %v960, 0
        %967 = vmatpush.bf16.msra.mxu0 0
        %968 = vmatpush.bf16.msra.mxu0 0
        %969 = vmatpush.bf16.msra.mxu0 0
        %970 = vmatpush.bf16.msra.mxu0 0
        %971 = vmatpush.bf16.msra.mxu0 0
        %972 = vmatpush.bf16.msra.mxu0 0
        %973 = vmatpush.bf16.msra.mxu0 0
        %974 = vmatpush.bf16.msra.mxu0 %v965
        %975 = vmatmul.bf16.gmra.mxu0 %v962
        %v976 = vpop.f32.mrf.mxu0
        %v977 = vadd.f32 0.0, %v976
        %v978 = vpop.f32.mrf.mxu0
        %979 = vdwg.mxu0
        %v981 = vunpack.c.l.b16 %v714
        %v982 = vpack.c.b16 %v981, %v981
        %983 = vrot.lane.b32.xlu0 %v982, 120
        %v984 = vpop.permute.xlu0 %983
        %v986 = vsel %vm715, %v955, 0
        %v989 = vsel %vm807, %v984, 0
        %991 = vmatpush.bf16.msra.mxu0 0
        %992 = vmatpush.bf16.msra.mxu0 0
        %993 = vmatpush.bf16.msra.mxu0 0
        %994 = vmatpush.bf16.msra.mxu0 0
        %995 = vmatpush.bf16.msra.mxu0 0
        %996 = vmatpush.bf16.msra.mxu0 0
        %997 = vmatpush.bf16.msra.mxu0 0
        %998 = vmatpush.bf16.msra.mxu0 %v989
        %999 = vmatmul.bf16.gmra.mxu0 %v986
        %v1000 = vpop.f32.mrf.mxu0
        %v1001 = vadd.f32 0.0, %v1000
        %v1002 = vpop.f32.mrf.mxu0
        %1003 = vdwg.mxu0
        %v1004 = vpack.c.bf16 %v977, %v977
        %v1005 = vpack.c.bf16 %v1001, %v1001
        %1008 = vrot.lane.b32.xlu0 %v1004, 8
        %v1009 = vpop.permute.xlu0 %1008
        %1010 = vrot.lane.b32.xlu0 %v1005, 8
        %v1011 = vpop.permute.xlu0 %1010
        %vm1014 = vcmask 126016
        %1015 = vst.msk [vmem:[#allocation3] sm:$0xf] %vm1014, %v1009
        %1016 = vst.msk [vmem:[#allocation3 + $0x4] sm:$0xf] %vm1014, %v1011
        %1017 = vrot.lane.b32.xlu0 %v850, 112
        %v1018 = vpop.permute.xlu0 %1017
        %1019 = vrot.lane.b32.xlu0 %v855, 112
        %v1020 = vpop.permute.xlu0 %1019
        %v1022 = vsel %vm715, %v1018, 0
        %v1025 = vsel %vm715, %v1020, 0
        %1027 = vmatpush.bf16.xpose.msra.mxu0 0
        %1028 = vmatpush.bf16.xpose.msra.mxu0 0
        %1029 = vmatpush.bf16.xpose.msra.mxu0 0
        %1030 = vmatpush.bf16.xpose.msra.mxu0 0
        %1031 = vmatpush.bf16.xpose.msra.mxu0 0
        %1032 = vmatpush.bf16.xpose.msra.mxu0 0
        %1033 = vmatpush.bf16.xpose.msra.mxu0 0
        %1034 = vmatpush.bf16.xpose.msra.mxu0 %v1025
        %1035 = vmatmul.bf16.gmra.mxu0 %v1022
        %v1036 = vpop.f32.mrf.mxu0
        %v1037 = vadd.f32 0.0, %v1036
        %v1038 = vpop.f32.mrf.mxu0
        %1039 = vdwg.mxu0
        %1040 = vrot.lane.b32.xlu0 %v879, 112
        %v1041 = vpop.permute.xlu0 %1040
        %1042 = vrot.lane.b32.xlu0 %v884, 112
        %v1043 = vpop.permute.xlu0 %1042
        %v1045 = vsel %vm715, %v1041, 0
        %v1048 = vsel %vm715, %v1043, 0
        %1050 = vmatpush.bf16.xpose.msra.mxu0 0
        %1051 = vmatpush.bf16.xpose.msra.mxu0 0
        %1052 = vmatpush.bf16.xpose.msra.mxu0 0
        %1053 = vmatpush.bf16.xpose.msra.mxu0 0
        %1054 = vmatpush.bf16.xpose.msra.mxu0 0
        %1055 = vmatpush.bf16.xpose.msra.mxu0 0
        %1056 = vmatpush.bf16.xpose.msra.mxu0 0
        %1057 = vmatpush.bf16.xpose.msra.mxu0 %v1048
        %1058 = vmatmul.bf16.gmra.mxu0 %v1045
        %v1059 = vpop.f32.mrf.mxu0
        %v1060 = vadd.f32 0.0, %v1059
        %v1061 = vpop.f32.mrf.mxu0
        %1062 = vdwg.mxu0
        %v1063 = vsel %vm715, %v1037, -inf
        %1064 = vmax.xlane.f32.xlu0 %v1063
        %v1065 = vpop.xlane.xlu0 %1064
        %v1066 = vsel %vm715, %v1060, -inf
        %1067 = vmax.xlane.f32.xlu0 %v1066
        %v1068 = vpop.xlane.xlu0 %1067
        %v1069 = vsub.f32 %v1037, %v1065
        %v1070 = vsub.f32 %v1060, %v1068
        %v1071 = vmul.f32 %v1069, 1.442695
        %v1072 = vpow.pop %v1071
        %v1073 = vmul.f32 %v1070, 1.442695
        %v1074 = vpow.pop %v1073
        %v1075 = vsel %vm715, %v1072, 0.0
        %1076 = vadd.xlane.f32.xlu0 %v1075
        %v1077 = vpop.xlane.xlu0 %1076
        %v1078 = vsel %vm715, %v1074, 0.0
        %1079 = vadd.xlane.f32.xlu0 %v1078
        %v1080 = vpop.xlane.xlu0 %1079
        %v1081 = vrcp.pop %v1077
        %v1082 = vmul.f32 %v1077, %v1081
        %v1083 = vsub.f32 1.0, %v1082
        %v1084 = vmul.f32 %v1081, %v1083
        %v1085 = vadd.f32 %v1081, %v1084
        %vm1086 = vweird.f32 %v1077
        %vm1087 = vweird.f32 %v1081
        %vm1088 = vmor %vm1086, %vm1087
        %v1089 = vsel %vm1088, %v1081, %v1085
        %v1090 = vand.u32 2147483647, %v1077
        %vm1091 = vcmp.eq.f32.partialorder %v1090, 8.507059e+37
        %v1092 = vand.u32 %v1077, 2147483648
        %v1093 = vor.u32 1.1754944e-38, %v1092
        %v1094 = vsel %vm1091, %v1093, %v1089
        %v1095 = vmul.f32 %v1072, %v1094
        %v1096 = vrcp.pop %v1080
        %v1097 = vmul.f32 %v1080, %v1096
        %v1098 = vsub.f32 1.0, %v1097
        %v1099 = vmul.f32 %v1096, %v1098
        %v1100 = vadd.f32 %v1096, %v1099
        %vm1101 = vweird.f32 %v1080
        %vm1102 = vweird.f32 %v1096
        %vm1103 = vmor %vm1101, %vm1102
        %v1104 = vsel %vm1103, %v1096, %v1100
        %v1105 = vand.u32 2147483647, %v1080
        %vm1106 = vcmp.eq.f32.partialorder %v1105, 8.507059e+37
        %v1107 = vand.u32 %v1080, 2147483648
        %v1108 = vor.u32 1.1754944e-38, %v1107
        %v1109 = vsel %vm1106, %v1108, %v1104
        %v1110 = vmul.f32 %v1074, %v1109
        %v1111 = vpack.c.bf16 %v1095, %v1095
        %v1112 = vpack.c.bf16 %v1110, %v1110
        %1113 = vrot.lane.b32.xlu0 %v958, 112
        %v1114 = vpop.permute.xlu0 %1113
        %v1116 = vsel %vm715, %v1111, 0
        %v1119 = vsel %vm807, %v1114, 0
        %1121 = vmatpush.bf16.msra.mxu0 0
        %1122 = vmatpush.bf16.msra.mxu0 0
        %1123 = vmatpush.bf16.msra.mxu0 0
        %1124 = vmatpush.bf16.msra.mxu0 0
        %1125 = vmatpush.bf16.msra.mxu0 0
        %1126 = vmatpush.bf16.msra.mxu0 0
        %1127 = vmatpush.bf16.msra.mxu0 0
        %1128 = vmatpush.bf16.msra.mxu0 %v1119
        %1129 = vmatmul.bf16.gmra.mxu0 %v1116
        %v1130 = vpop.f32.mrf.mxu0
        %v1131 = vadd.f32 0.0, %v1130
        %v1132 = vpop.f32.mrf.mxu0
        %1133 = vdwg.mxu0
        %1134 = vrot.lane.b32.xlu0 %v982, 112
        %v1135 = vpop.permute.xlu0 %1134
        %v1137 = vsel %vm715, %v1112, 0
        %v1140 = vsel %vm807, %v1135, 0
        %1142 = vmatpush.bf16.msra.mxu0 0
        %1143 = vmatpush.bf16.msra.mxu0 0
        %1144 = vmatpush.bf16.msra.mxu0 0
        %1145 = vmatpush.bf16.msra.mxu0 0
        %1146 = vmatpush.bf16.msra.mxu0 0
        %1147 = vmatpush.bf16.msra.mxu0 0
        %1148 = vmatpush.bf16.msra.mxu0 0
        %1149 = vmatpush.bf16.msra.mxu0 %v1140
        %1150 = vmatmul.bf16.gmra.mxu0 %v1137
        %v1151 = vpop.f32.mrf.mxu0
        %v1152 = vadd.f32 0.0, %v1151
        %v1153 = vpop.f32.mrf.mxu0
        %1154 = vdwg.mxu0
        %v1155 = vpack.c.bf16 %v1131, %v1131
        %v1156 = vpack.c.bf16 %v1152, %v1152
        %1159 = vrot.lane.b32.xlu0 %v1155, 16
        %v1160 = vpop.permute.xlu0 %1159
        %1161 = vrot.lane.b32.xlu0 %v1156, 16
        %v1162 = vpop.permute.xlu0 %1161
        %vm1165 = vcmask 191616
        %1166 = vst.msk [vmem:[#allocation3] sm:$0xf] %vm1165, %v1160
        %1167 = vst.msk [vmem:[#allocation3 + $0x4] sm:$0xf] %vm1165, %v1162
        %1168 = vrot.lane.b32.xlu0 %v850, 104
        %v1169 = vpop.permute.xlu0 %1168
        %1170 = vrot.lane.b32.xlu0 %v855, 104
        %v1171 = vpop.permute.xlu0 %1170
        %v1173 = vsel %vm715, %v1169, 0
        %v1176 = vsel %vm715, %v1171, 0
        %1178 = vmatpush.bf16.xpose.msra.mxu0 0
        %1179 = vmatpush.bf16.xpose.msra.mxu0 0
        %1180 = vmatpush.bf16.xpose.msra.mxu0 0
        %1181 = vmatpush.bf16.xpose.msra.mxu0 0
        %1182 = vmatpush.bf16.xpose.msra.mxu0 0
        %1183 = vmatpush.bf16.xpose.msra.mxu0 0
        %1184 = vmatpush.bf16.xpose.msra.mxu0 0
        %1185 = vmatpush.bf16.xpose.msra.mxu0 %v1176
        %1186 = vmatmul.bf16.gmra.mxu0 %v1173
        %v1187 = vpop.f32.mrf.mxu0
        %v1188 = vadd.f32 0.0, %v1187
        %v1189 = vpop.f32.mrf.mxu0
        %1190 = vdwg.mxu0
        %1191 = vrot.lane.b32.xlu0 %v879, 104
        %v1192 = vpop.permute.xlu0 %1191
        %1193 = vrot.lane.b32.xlu0 %v884, 104
        %v1194 = vpop.permute.xlu0 %1193
        %v1196 = vsel %vm715, %v1192, 0
        %v1199 = vsel %vm715, %v1194, 0
        %1201 = vmatpush.bf16.xpose.msra.mxu0 0
        %1202 = vmatpush.bf16.xpose.msra.mxu0 0
        %1203 = vmatpush.bf16.xpose.msra.mxu0 0
        %1204 = vmatpush.bf16.xpose.msra.mxu0 0
        %1205 = vmatpush.bf16.xpose.msra.mxu0 0
        %1206 = vmatpush.bf16.xpose.msra.mxu0 0
        %1207 = vmatpush.bf16.xpose.msra.mxu0 0
        %1208 = vmatpush.bf16.xpose.msra.mxu0 %v1199
        %1209 = vmatmul.bf16.gmra.mxu0 %v1196
        %v1210 = vpop.f32.mrf.mxu0
        %v1211 = vadd.f32 0.0, %v1210
        %v1212 = vpop.f32.mrf.mxu0
        %1213 = vdwg.mxu0
        %v1214 = vsel %vm715, %v1188, -inf
        %1215 = vmax.xlane.f32.xlu0 %v1214
        %v1216 = vpop.xlane.xlu0 %1215
        %v1217 = vsel %vm715, %v1211, -inf
        %1218 = vmax.xlane.f32.xlu0 %v1217
        %v1219 = vpop.xlane.xlu0 %1218
        %v1220 = vsub.f32 %v1188, %v1216
        %v1221 = vsub.f32 %v1211, %v1219
        %v1222 = vmul.f32 %v1220, 1.442695
        %v1223 = vpow.pop %v1222
        %v1224 = vmul.f32 %v1221, 1.442695
        %v1225 = vpow.pop %v1224
        %v1226 = vsel %vm715, %v1223, 0.0
        %1227 = vadd.xlane.f32.xlu0 %v1226
        %v1228 = vpop.xlane.xlu0 %1227
        %v1229 = vsel %vm715, %v1225, 0.0
        %1230 = vadd.xlane.f32.xlu0 %v1229
        %v1231 = vpop.xlane.xlu0 %1230
        %v1232 = vrcp.pop %v1228
        %v1233 = vmul.f32 %v1228, %v1232
        %v1234 = vsub.f32 1.0, %v1233
        %v1235 = vmul.f32 %v1232, %v1234
        %v1236 = vadd.f32 %v1232, %v1235
        %vm1237 = vweird.f32 %v1228
        %vm1238 = vweird.f32 %v1232
        %vm1239 = vmor %vm1237, %vm1238
        %v1240 = vsel %vm1239, %v1232, %v1236
        %v1241 = vand.u32 2147483647, %v1228
        %vm1242 = vcmp.eq.f32.partialorder %v1241, 8.507059e+37
        %v1243 = vand.u32 %v1228, 2147483648
        %v1244 = vor.u32 1.1754944e-38, %v1243
        %v1245 = vsel %vm1242, %v1244, %v1240
        %v1246 = vmul.f32 %v1223, %v1245
        %v1247 = vrcp.pop %v1231
        %v1248 = vmul.f32 %v1231, %v1247
        %v1249 = vsub.f32 1.0, %v1248
        %v1250 = vmul.f32 %v1247, %v1249
        %v1251 = vadd.f32 %v1247, %v1250
        %vm1252 = vweird.f32 %v1231
        %vm1253 = vweird.f32 %v1247
        %vm1254 = vmor %vm1252, %vm1253
        %v1255 = vsel %vm1254, %v1247, %v1251
        %v1256 = vand.u32 2147483647, %v1231
        %vm1257 = vcmp.eq.f32.partialorder %v1256, 8.507059e+37
        %v1258 = vand.u32 %v1231, 2147483648
        %v1259 = vor.u32 1.1754944e-38, %v1258
        %v1260 = vsel %vm1257, %v1259, %v1255
        %v1261 = vmul.f32 %v1225, %v1260
        %v1262 = vpack.c.bf16 %v1246, %v1246
        %v1263 = vpack.c.bf16 %v1261, %v1261
        %1264 = vrot.lane.b32.xlu0 %v958, 104
        %v1265 = vpop.permute.xlu0 %1264
        %v1267 = vsel %vm715, %v1262, 0
        %v1270 = vsel %vm807, %v1265, 0
        %1272 = vmatpush.bf16.msra.mxu0 0
        %1273 = vmatpush.bf16.msra.mxu0 0
        %1274 = vmatpush.bf16.msra.mxu0 0
        %1275 = vmatpush.bf16.msra.mxu0 0
        %1276 = vmatpush.bf16.msra.mxu0 0
        %1277 = vmatpush.bf16.msra.mxu0 0
        %1278 = vmatpush.bf16.msra.mxu0 0
        %1279 = vmatpush.bf16.msra.mxu0 %v1270
        %1280 = vmatmul.bf16.gmra.mxu0 %v1267
        %v1281 = vpop.f32.mrf.mxu0
        %v1282 = vadd.f32 0.0, %v1281
        %v1283 = vpop.f32.mrf.mxu0
        %1284 = vdwg.mxu0
        %1285 = vrot.lane.b32.xlu0 %v982, 104
        %v1286 = vpop.permute.xlu0 %1285
        %v1288 = vsel %vm715, %v1263, 0
        %v1291 = vsel %vm807, %v1286, 0
        %1293 = vmatpush.bf16.msra.mxu0 0
        %1294 = vmatpush.bf16.msra.mxu0 0
        %1295 = vmatpush.bf16.msra.mxu0 0
        %1296 = vmatpush.bf16.msra.mxu0 0
        %1297 = vmatpush.bf16.msra.mxu0 0
        %1298 = vmatpush.bf16.msra.mxu0 0
        %1299 = vmatpush.bf16.msra.mxu0 0
        %1300 = vmatpush.bf16.msra.mxu0 %v1291
        %1301 = vmatmul.bf16.gmra.mxu0 %v1288
        %v1302 = vpop.f32.mrf.mxu0
        %v1303 = vadd.f32 0.0, %v1302
        %v1304 = vpop.f32.mrf.mxu0
        %1305 = vdwg.mxu0
        %v1306 = vpack.c.bf16 %v1282, %v1282
        %v1307 = vpack.c.bf16 %v1303, %v1303
        %1310 = vrot.lane.b32.xlu0 %v1306, 24
        %v1311 = vpop.permute.xlu0 %1310
        %1312 = vrot.lane.b32.xlu0 %v1307, 24
        %v1313 = vpop.permute.xlu0 %1312
        %vm1316 = vcmask 257216
        %1317 = vst.msk [vmem:[#allocation3] sm:$0xf] %vm1316, %v1311
        %1318 = vst.msk [vmem:[#allocation3 + $0x4] sm:$0xf] %vm1316, %v1313
        %v1319 = vld [vmem:[#allocation3] sm:$0xf]
        %v1320 = vld [vmem:[#allocation3 + $0x4] sm:$0xf]
        %v1321 = vld [vmem:[%s535] sm:$0xf]
        %v1322 = vld [vmem:[%s535 + $0x4] sm:$0xf]
        %v1323 = vld [vmem:[%s535 + $0x8] sm:$0xf]
        %v1324 = vld [vmem:[%s535 + $0xc] sm:$0xf]
        %v1325 = vld [vmem:[%s545 + $0x3] sm:$0x1]
        %v1326 = vperm.slane %v1325, 0
        %v1329 = vunpack.c.l.b16 %v1319
        %v1330 = vunpack.c.l.b16 %v1320
        %v1331 = vpack.c.b16 %v1330, %v1329
        %v1336 = vunpack.c.l.b16 %v1321
        %v1337 = vunpack.c.l.b16 %v1322
        %v1338 = vunpack.c.l.b16 %v1323
        %v1339 = vunpack.c.l.b16 %v1324
        %v1340 = vpack.c.b16 %v1337, %v1336
        %v1341 = vpack.c.b16 %v1339, %v1338
        %v1345 = vsel %vm623, %v1331, 0
        %1347 = vmatpush.bf16.msra.mxu0 0
        %1348 = vmatpush.bf16.msra.mxu0 0
        %1349 = vmatpush.bf16.msra.mxu0 0
        %1350 = vmatpush.bf16.msra.mxu0 0
        %1351 = vmatpush.bf16.msra.mxu0 0
        %1352 = vmatpush.bf16.msra.mxu0 0
        %1353 = vmatpush.bf16.msra.mxu0 %v1341
        %1354 = vmatpush.bf16.msra.mxu0 %v1340
        %1355 = vmatmul.bf16.gmra.mxu0 %v1345
        %v1356 = vpop.f32.mrf.mxu0
        %v1357 = vadd.f32 %v1326, %v1356
        %v1358 = vpop.f32.mrf.mxu0
        %v1359 = vadd.f32 %v1326, %v1358
        %1360 = vdwg.mxu0
        %v1361 = vadd.f32 %v602, %v1357
        %v1362 = vadd.f32 %v603, %v1359
        %v1363 = vld [vmem:[%s545 + $0x4] sm:$0x1]
        %v1364 = vld [vmem:[%s545 + $0x5] sm:$0x1]
        %v1365 = vsel %vm623, %v1361, 0.0
        %1366 = vadd.xlane.f32.xlu0 %v1365
        %v1367 = vpop.xlane.xlu0 %1366
        %v1368 = vsel %vm623, %v1362, 0.0
        %1369 = vadd.xlane.f32.xlu0 %v1368
        %v1370 = vpop.xlane.xlu0 %1369
        %v1371 = vrcp.pop 32.0
        %v1372 = vmul.f32 32.0, %v1371
        %v1373 = vsub.f32 1.0, %v1372
        %v1374 = vmul.f32 %v1371, %v1373
        %v1375 = vadd.f32 %v1371, %v1374
        %vm1376 = vweird.f32 %v1371
        %v1377 = vsel %vm1376, %v1371, %v1375
        %v1378 = vmul.f32 %v1367, %v1377
        %v1379 = vmul.f32 %v1370, %v1377
        %v1380 = vsub.f32 %v1361, %v1378
        %v1381 = vsub.f32 %v1362, %v1379
        %v1382 = vmul.f32 %v1380, %v1380
        %v1383 = vmul.f32 %v1381, %v1381
        %v1384 = vsel %vm623, %v1382, 0.0
        %1385 = vadd.xlane.f32.xlu0 %v1384
        %v1386 = vpop.xlane.xlu0 %1385
        %v1387 = vsel %vm623, %v1383, 0.0
        %1388 = vadd.xlane.f32.xlu0 %v1387
        %v1389 = vpop.xlane.xlu0 %1388
        %v1390 = vmul.f32 %v1386, %v1377
        %v1391 = vmul.f32 %v1389, %v1377
        %v1392 = vadd.f32 %v1390, 1e-05
        %v1393 = vadd.f32 %v1391, 1e-05
        %v1394 = vrsqrt.pop %v1392
        %v1395 = vmul.f32 %v1394, %v1392
        %v1396 = vmul.f32 %v1395, %v1394
        %v1397 = vmul.f32 0.5, %v1396
        %v1398 = vsub.f32 1.5, %v1397
        %v1399 = vmul.f32 %v1394, %v1398
        %vm1400 = vweird.f32 %v1392
        %vm1401 = vweird.f32 %v1394
        %vm1402 = vmor %vm1400, %vm1401
        %v1403 = vsel %vm1402, %v1394, %v1399
        %v1404 = vrsqrt.pop %v1393
        %v1405 = vmul.f32 %v1404, %v1393
        %v1406 = vmul.f32 %v1405, %v1404
        %v1407 = vmul.f32 0.5, %v1406
        %v1408 = vsub.f32 1.5, %v1407
        %v1409 = vmul.f32 %v1404, %v1408
        %vm1410 = vweird.f32 %v1393
        %vm1411 = vweird.f32 %v1404
        %vm1412 = vmor %vm1410, %vm1411
        %v1413 = vsel %vm1412, %v1404, %v1409
        %v1414 = vmul.f32 %v1380, %v1403
        %v1415 = vmul.f32 %v1381, %v1413
        %v1416 = vperm.slane %v1363, 0
        %v1417 = vmul.f32 %v1414, %v1416
        %v1418 = vmul.f32 %v1415, %v1416
        %v1419 = vperm.slane %v1364, 0
        %v1420 = vadd.f32 %v1417, %v1419
        %v1421 = vadd.f32 %v1418, %v1419
        %v1422 = vpack.c.bf16 %v1421, %v1420
        %v1423 = vld [vmem:[%s456] sm:$0xf]
        %v1424 = vld [vmem:[%s456 + $0x4] sm:$0xf]
        %v1425 = vld [vmem:[%s456 + $0x8] sm:$0xf]
        %v1426 = vld [vmem:[%s456 + $0xc] sm:$0xf]
        %v1427 = vld [vmem:[%s545 + $0x6] sm:$0x1]
        %v1428 = vperm.slane %v1427, 0
        %v1433 = vunpack.c.l.b16 %v1423
        %v1434 = vunpack.c.l.b16 %v1424
        %v1435 = vunpack.c.l.b16 %v1425
        %v1436 = vunpack.c.l.b16 %v1426
        %v1437 = vpack.c.b16 %v1434, %v1433
        %v1438 = vpack.c.b16 %v1436, %v1435
        %v1442 = vsel %vm623, %v1422, 0
        %1444 = vmatpush.bf16.msra.mxu0 0
        %1445 = vmatpush.bf16.msra.mxu0 0
        %1446 = vmatpush.bf16.msra.mxu0 0
        %1447 = vmatpush.bf16.msra.mxu0 0
        %1448 = vmatpush.bf16.msra.mxu0 0
        %1449 = vmatpush.bf16.msra.mxu0 0
        %1450 = vmatpush.bf16.msra.mxu0 %v1438
        %1451 = vmatpush.bf16.msra.mxu0 %v1437
        %1452 = vmatmul.bf16.gmra.mxu0 %v1442
        %v1453 = vpop.f32.mrf.mxu0
        %v1454 = vadd.f32 %v1428, %v1453
        %v1455 = vpop.f32.mrf.mxu0
        %v1456 = vadd.f32 %v1428, %v1455
        %1457 = vdwg.mxu0
        %v1458 = vmul.f32 %v1454, 0.5
        %v1459 = vmul.f32 %v1456, 0.5
        %v1460 = vmul.f32 %v1454, 0.70710677
        %v1461 = vmul.f32 %v1456, 0.70710677
        %vm1462 = vcmp.ge.f32.partialorder %v1460, 0.0
        %vm1463 = vcmp.ge.f32.partialorder %v1461, 0.0
        %v1464 = vsel %vm1462, 1.0, -1.0
        %v1465 = vsel %vm1463, 1.0, -1.0
        %v1466 = vand.u32 2147483647, %v1460
        %v1467 = vand.u32 2147483647, %v1461
        %v1468 = vmul.f32 %v1466, 0.3275911
        %v1469 = vmul.f32 %v1467, 0.3275911
        %v1470 = vadd.f32 %v1468, 1.0
        %v1471 = vadd.f32 %v1469, 1.0
        %v1472 = vrcp.pop %v1470
        %v1473 = vrcp.pop %v1471
        %v1474 = vmul.f32 %v1472, 1.0614054
        %v1475 = vmul.f32 %v1473, 1.0614054
        %v1476 = vadd.f32 %v1474, -1.4531521
        %v1477 = vadd.f32 %v1475, -1.4531521
        %v1478 = vmul.f32 %v1476, %v1472
        %v1479 = vmul.f32 %v1477, %v1473
        %v1480 = vadd.f32 %v1478, 1.4214138
        %v1481 = vadd.f32 %v1479, 1.4214138
        %v1482 = vmul.f32 %v1480, %v1472
        %v1483 = vmul.f32 %v1481, %v1473
        %v1484 = vadd.f32 %v1482, -0.28449672
        %v1485 = vadd.f32 %v1483, -0.28449672
        %v1486 = vmul.f32 %v1484, %v1472
        %v1487 = vmul.f32 %v1485, %v1473
        %v1488 = vadd.f32 %v1486, 0.2548296
        %v1489 = vadd.f32 %v1487, 0.2548296
        %v1490 = vmul.f32 %v1488, %v1472
        %v1491 = vmul.f32 %v1489, %v1473
        %v1492 = vsub.f32 0.0, %v1466
        %v1493 = vsub.f32 0.0, %v1467
        %v1494 = vmul.f32 %v1492, %v1466
        %v1495 = vmul.f32 %v1493, %v1467
        %v1496 = vmul.f32 %v1494, 1.442695
        %v1497 = vpow.pop %v1496
        %v1498 = vmul.f32 %v1495, 1.442695
        %v1499 = vpow.pop %v1498
        %v1500 = vmul.f32 %v1490, %v1497
        %v1501 = vmul.f32 %v1491, %v1499
        %v1502 = vsub.f32 1.0, %v1500
        %v1503 = vsub.f32 1.0, %v1501
        %v1504 = vmul.f32 %v1464, %v1502
        %v1505 = vmul.f32 %v1465, %v1503
        %v1506 = vadd.f32 %v1504, 1.0
        %v1507 = vadd.f32 %v1505, 1.0
        %v1508 = vmul.f32 %v1458, %v1506
        %v1509 = vmul.f32 %v1459, %v1507
        %v1510 = vpack.c.bf16 %v1509, %v1508
        %v1511 = vld [vmem:[%s540] sm:$0xf]
        %v1512 = vld [vmem:[%s540 + $0x4] sm:$0xf]
        %v1513 = vld [vmem:[%s540 + $0x8] sm:$0xf]
        %v1514 = vld [vmem:[%s540 + $0xc] sm:$0xf]
        %v1515 = vld [vmem:[%s540 + $0x10] sm:$0xf]
        %v1516 = vld [vmem:[%s540 + $0x14] sm:$0xf]
        %v1517 = vld [vmem:[%s540 + $0x18] sm:$0xf]
        %v1518 = vld [vmem:[%s540 + $0x1c] sm:$0xf]
        %v1519 = vld [vmem:[%s545 + $0x7] sm:$0x1]
        %v1520 = vperm.slane %v1519, 0
        %v1529 = vunpack.c.l.b16 %v1511
        %v1530 = vunpack.c.l.b16 %v1512
        %v1531 = vunpack.c.l.b16 %v1513
        %v1532 = vunpack.c.l.b16 %v1514
        %v1533 = vunpack.c.l.b16 %v1515
        %v1534 = vunpack.c.l.b16 %v1516
        %v1535 = vunpack.c.l.b16 %v1517
        %v1536 = vunpack.c.l.b16 %v1518
        %v1537 = vpack.c.b16 %v1530, %v1529
        %v1538 = vpack.c.b16 %v1532, %v1531
        %v1539 = vpack.c.b16 %v1534, %v1533
        %v1540 = vpack.c.b16 %v1536, %v1535
        %vm1545 = vcmask 523264
        %v1547 = vsel %vm1545, %v1510, 0
        %1549 = vmatpush.bf16.msra.mxu0 0
        %1550 = vmatpush.bf16.msra.mxu0 0
        %1551 = vmatpush.bf16.msra.mxu0 0
        %1552 = vmatpush.bf16.msra.mxu0 0
        %1553 = vmatpush.bf16.msra.mxu0 %v1540
        %1554 = vmatpush.bf16.msra.mxu0 %v1539
        %1555 = vmatpush.bf16.msra.mxu0 %v1538
        %1556 = vmatpush.bf16.msra.mxu0 %v1537
        %1557 = vmatmul.bf16.gmra.mxu0 %v1547
        %v1558 = vpop.f32.mrf.mxu0
        %v1559 = vadd.f32 %v1520, %v1558
        %v1560 = vpop.f32.mrf.mxu0
        %v1561 = vadd.f32 %v1520, %v1560
        %1562 = vdwg.mxu0
        %v1563 = vadd.f32 %v1420, %v1559
        %v1564 = vadd.f32 %v1421, %v1561
        %v1565 = vld [vmem:[%s545 + $0x8] sm:$0x1]
        %v1566 = vld [vmem:[%s545 + $0x9] sm:$0x1]
        %v1567 = vsel %vm623, %v1563, 0.0
        %1568 = vadd.xlane.f32.xlu0 %v1567
        %v1569 = vpop.xlane.xlu0 %1568
        %v1570 = vsel %vm623, %v1564, 0.0
        %1571 = vadd.xlane.f32.xlu0 %v1570
        %v1572 = vpop.xlane.xlu0 %1571
        %v1573 = vmul.f32 %v1569, %v1377
        %v1574 = vmul.f32 %v1572, %v1377
        %v1575 = vsub.f32 %v1563, %v1573
        %v1576 = vsub.f32 %v1564, %v1574
        %v1577 = vmul.f32 %v1575, %v1575
        %v1578 = vmul.f32 %v1576, %v1576
        %v1579 = vsel %vm623, %v1577, 0.0
        %1580 = vadd.xlane.f32.xlu0 %v1579
        %v1581 = vpop.xlane.xlu0 %1580
        %v1582 = vsel %vm623, %v1578, 0.0
        %1583 = vadd.xlane.f32.xlu0 %v1582
        %v1584 = vpop.xlane.xlu0 %1583
        %v1585 = vmul.f32 %v1581, %v1377
        %v1586 = vmul.f32 %v1584, %v1377
        %v1587 = vadd.f32 %v1585, 1e-05
        %v1588 = vadd.f32 %v1586, 1e-05
        %v1589 = vrsqrt.pop %v1587
        %v1590 = vmul.f32 %v1589, %v1587
        %v1591 = vmul.f32 %v1590, %v1589
        %v1592 = vmul.f32 0.5, %v1591
        %v1593 = vsub.f32 1.5, %v1592
        %v1594 = vmul.f32 %v1589, %v1593
        %vm1595 = vweird.f32 %v1587
        %vm1596 = vweird.f32 %v1589
        %vm1597 = vmor %vm1595, %vm1596
        %v1598 = vsel %vm1597, %v1589, %v1594
        %v1599 = vrsqrt.pop %v1588
        %v1600 = vmul.f32 %v1599, %v1588
        %v1601 = vmul.f32 %v1600, %v1599
        %v1602 = vmul.f32 0.5, %v1601
        %v1603 = vsub.f32 1.5, %v1602
        %v1604 = vmul.f32 %v1599, %v1603
        %vm1605 = vweird.f32 %v1588
        %vm1606 = vweird.f32 %v1599
        %vm1607 = vmor %vm1605, %vm1606
        %v1608 = vsel %vm1607, %v1599, %v1604
        %v1609 = vmul.f32 %v1575, %v1598
        %v1610 = vmul.f32 %v1576, %v1608
        %v1611 = vperm.slane %v1565, 0
        %v1612 = vmul.f32 %v1609, %v1611
        %v1613 = vmul.f32 %v1610, %v1611
        %v1614 = vperm.slane %v1566, 0
        %v1615 = vadd.f32 %v1612, %v1614
        %v1616 = vadd.f32 %v1613, %v1614
        %1617 = vst.msk [vmem:[#allocation2] sm:$0xff] %vm623, %v1615
        %1618 = vst.msk [vmem:[#allocation2 + $0x8] sm:$0xff] %vm623, %v1616
        %p1619 = scmp.eq.s32.totalorder %s31, 1
        // Predicated region
        $region81: #{tpu_custom_call.1} parent=63 // pred_check
          %p1620 = pneg %p1619
        $region82: #{tpu_custom_call.1} parent=63 // pred_check_branch
          %1622 = sbr.rel (%p1620) target = $region84
        $region83: #{tpu_custom_call.1} parent=63 // pred_region
          %v1623 = vld [vmem:[%s9] sm:$0x1]
          %v1625 = vperm.slane %v1623, 0
          %v1627 = vmul.f32 %v1615, %v1625
          %v1628 = vmul.f32 %v1616, %v1625
          %v1631 = vrot.slane %v1628, 7
          %vm1634 = vcmask 261127
          %v1635 = vsel %vm1634, %v1627, 0.0
          %1636 = vadd.xlane.f32.xlu0 %v1635
          %v1637 = vpop.xlane.xlu0 %1636
          %vm1638 = vcmask 253952
          %v1639 = vsel %vm1638, %v1631, 0.0
          %1640 = vadd.xlane.f32.xlu0 %v1639
          %v1641 = vpop.xlane.xlu0 %1640
          %v1642 = vld [vmem:[#allocation4] sm:$0x1]
          %v1644 = vperm.slane %v1642, 0
          %v1646 = vadd.f32 %v1637, %v1644
          %v1647 = vadd.f32 %v1641, %v1644
          %vm1648 = vcmask 7175
          %1649 = vst.msk [vmem:[%s549 - $0x7] sm:$0x80] %vm1648, %v1646
          %vm1650 = vcmask 0
          %1651 = vst.msk [vmem:[%s549 + $0x1] sm:$0x1] %vm1650, %v1647
        $region84: #{tpu_custom_call.1} parent=63 // pred_fallthru
          _
        %p1652 = scmp.lt.s32.totalorder %s30, 0
        %s1653 = scalar_select %p1652, %s30, 0
        %s1654 = smul.addr %s1653, 2
        %s1655 = scalar_lea.vmem %s11, %s1654
        // Predicated region
        $region85: #{tpu_custom_call.1} parent=63 // pred_check
          %p1656 = pneg %p317
        $region86: #{tpu_custom_call.1} parent=63 // pred_check_branch
          %1658 = sbr.rel (%p1656) target = $region88
        $region87: #{tpu_custom_call.1} parent=63 // pred_region
          _
        $region88: #{tpu_custom_call.1} parent=63 // pred_fallthru
          _
        // Predicated region
        $region89: #{tpu_custom_call.1} parent=63 // pred_check
          %p1659 = pneg %p317
        $region90: #{tpu_custom_call.1} parent=63 // pred_check_branch
          %1661 = sbr.rel (%p1659) target = $region92
        $region91: #{tpu_custom_call.1} parent=63 // pred_region
          %p1662 = scmp.lt.s32.totalorder %s30, 0
          %s1663 = scalar_select %p1662, %s30, 0
          %s1664 = smul.addr %s1663, 2
          %s1665 = scalar_lea.vmem %s11, %s1664
        $region92: #{tpu_custom_call.1} parent=63 // pred_fallthru
          _
      $region64: #{tpu_custom_call.1} parent=5 // pred_fallthru
        _
      %p1666 = scmp.le.s32.totalorder 2, %s21
      // Predicated region
      $region93: #{tpu_custom_call.1} parent=5 // pred_check
        %p1667 = pneg %p1666
      $region94: #{tpu_custom_call.1} parent=5 // pred_check_branch
        %1669 = sbr.rel (%p1667) target = $region96
      $region95: #{tpu_custom_call.1} parent=5 // pred_region
        %s1670 = ssub.s32 %s21, 2
      $region96: #{tpu_custom_call.1} parent=5 // pred_fallthru
        _
    $region6: #{tpu_custom_call.1} parent=1 // loop_footer
      %s25 = sadd.s32 1, %s21
    $region7: #{tpu_custom_call.1} parent=1 // loop_footer_branch
      %20 = sbr.rel target = $region3
    $region8: #{tpu_custom_call.1} parent=1 // loop_exit
      _
    %1671 = vsyncpa [#allocation6], 1
    %s1672 = scalar_lea.sflag [#allocation6], 1
    %1673 = vsyncpa %s1672, 1
    %1674 = vsyncpa [#allocation8], 1

</llo_original>
